<compile_context>
chip_gen: v5e
topology: v5e:2x2
jax: 0.10.0
libtpu: 0.0.40
codegen_flags: <defaults>
</compile_context>

<pallas_src>
import jax
import jax.numpy as jnp
from jax.experimental import pallas as pl
from jax.experimental.pallas import tpu as pltpu

_EPS = 1e-8


# --------------------------- fused per-graph kernel ---------------------------
def _fused_gnn_kernel(a_ref, x_ref,
                      w0_ref, b0_ref, w1_ref, b1_ref, w2_ref, b2_ref,
                      wa1_ref, ba1_ref, wa2_ref, ba2_ref,
                      proto_ref, lastw_ref,
                      mask_ref, kl_ref, conn_ref, gemb_ref,
                      dist_ref, sim_ref, logits_ref, probs_ref):
    a = a_ref[...]                         # (NODES, NODES) bf16, this graph's diagonal block
    h_bf = x_ref[...]                      # (NODES, F)      bf16

    # ---- 3 GCN layers: H = ReLU(A @ (H W) + b); XW computed once per layer ----
    def gcn(h_in_bf, w_ref, b_ref):
        xw = jnp.dot(h_in_bf, w_ref[...], preferred_element_type=jnp.float32)      # f32
        ah = jnp.dot(a, xw.astype(jnp.bfloat16), preferred_element_type=jnp.float32)
        return jnp.maximum(ah + b_ref[...], 0.0)                                    # f32

    h = gcn(h_bf, w0_ref, b0_ref)
    h = gcn(h.astype(jnp.bfloat16), w1_ref, b1_ref)
    h = gcn(h.astype(jnp.bfloat16), w2_ref, b2_ref)                # (NODES, H) f32
    h_bf = h.astype(jnp.bfloat16)

    # ---- node assignment head: 2-layer MLP -> 2-way softmax ----
    t = jnp.maximum(
        jnp.dot(h_bf, wa1_ref[...], preferred_element_type=jnp.float32) + ba1_ref[...],
        0.0)
    logit2 = jnp.dot(t.astype(jnp.bfloat16), wa2_ref[...],
                     preferred_element_type=jnp.float32) + ba2_ref[...]   # (NODES, 2) f32
    m = jnp.max(logit2, axis=-1, keepdims=True)
    e = jnp.exp(logit2 - m)
    s = e * pl.reciprocal(jnp.sum(e, axis=-1, keepdims=True), approx=True)  # (NODES, 2)

    active = s[:, 0:1]                                                      # (NODES, 1)
    mask_ref[...] = (active > 0.5).astype(jnp.float32)

    # per-graph KL partial sum vs uniform(0.5); divided by true N in the JAX epilogue
    kl = s * (jnp.log(s + _EPS) - jnp.log(0.5))
    kl_ref[...] = jnp.sum(jnp.sum(kl, axis=-1, keepdims=True), axis=0, keepdims=True)

    # per-graph connectivity statistic S^T A S (block-diagonal A => global conn = sum_b)
    as_ = jnp.dot(a, s.astype(jnp.bfloat16), preferred_element_type=jnp.float32)   # (NODES, 2)
    conn_ref[...] = jax.lax.dot_general(s, as_, (((0,), (0,)), ((), ())),
                                        preferred_element_type=jnp.float32)        # (2, 2)

    # active-weighted mean-pooled graph embedding (pool row == 1/NODES for this graph)
    n_nodes = h.shape[0]
    g = jnp.sum(h * active, axis=0, keepdims=True) / float(n_nodes)    # (1, H) f32
    gemb_ref[...] = g

    # ---- prototype distances / similarity / classifier (fused) ----
    p = proto_ref[...]                                                  # (P, H) f32
    g2 = jnp.sum(g * g, axis=-1, keepdims=True)                         # (1, 1)
    ones_row = jnp.ones((1, p.shape[1]), dtype=jnp.float32)
    p2 = jax.lax.dot_general(ones_row, p * p, (((1,), (1,)), ((), ())),
                             preferred_element_type=jnp.float32)        # (1, P)
    gp = jax.lax.dot_general(g, p, (((1,), (1,)), ((), ())),
                             preferred_element_type=jnp.float32)        # (1, P)
    dist = jnp.maximum(g2 + p2 - 2.0 * gp, 0.0)                         # squared L2
    dist_ref[...] = dist
    sim = jnp.log((dist + 1.0) / (dist + 1e-4))
    sim_ref[...] = sim

    logits = jnp.dot(sim, lastw_ref[...], preferred_element_type=jnp.float32)  # (1, C)
    logits_ref[...] = logits
    ml = jnp.max(logits, axis=-1, keepdims=True)
    el = jnp.exp(logits - ml)
    probs_ref[...] = el * pl.reciprocal(jnp.sum(el, axis=-1, keepdims=True), approx=True)


def _rep2(arr):
    # Replicated (grid-invariant) full-extent 2-D block: DMA'd once, stays resident.
    return pl.BlockSpec(arr.shape, lambda b: (0, 0))


# --------------------------------- wrapper ------------------------------------
def init_params(key, input_dim, hidden_dim, assign_hidden, num_prototypes, output_dim):
    ks = jax.random.split(key, 7)

    def dense(k, fan_in, fan_out):
        w = (jax.random.normal(k, (fan_in, fan_out), jnp.float32)
             / jnp.sqrt(float(fan_in))).astype(jnp.bfloat16)   # streamed in bf16
        b = jnp.zeros((1, fan_out), jnp.float32)               # bias added in f32
        return w, b

    w0, b0 = dense(ks[0], input_dim, hidden_dim)
    w1, b1 = dense(ks[1], hidden_dim, hidden_dim)
    w2, b2 = dense(ks[2], hidden_dim, hidden_dim)
    wa1, ba1 = dense(ks[3], hidden_dim, assign_hidden)
    wa2, ba2 = dense(ks[4], assign_hidden, 2)
    prototypes = jax.random.normal(ks[5], (num_prototypes, hidden_dim), jnp.float32)
    last_w = jax.random.normal(ks[6], (num_prototypes, output_dim), jnp.float32) * 0.1
    return dict(gcn=[(w0, b0), (w1, b1), (w2, b2)],
                assign=(wa1, ba1, wa2, ba2),
                prototypes=prototypes, last_w=last_w)


@jax.jit
def gnn_nets_forward(x_blocks, a_blocks, params):
    """x_blocks: [B, NODES, F] node features; a_blocks: [B, NODES, NODES] per-graph
    symmetric-normalized adjacency (the diagonal blocks of the block-diagonal batch A_hat)."""
    B, NODES, F = x_blocks.shape
    (w0, b0), (w1, b1), (w2, b2) = params["gcn"]
    wa1, ba1, wa2, ba2 = params["assign"]
    proto = params["prototypes"]
    lastw = params["last_w"]
    H = w0.shape[1]
    P, C = lastw.shape
    N = B * NODES

    a_bf = a_blocks.astype(jnp.bfloat16)
    x_bf = x_blocks.astype(jnp.bfloat16)

    per_graph_3d = lambda d1, d2: pl.BlockSpec((None, d1, d2), lambda b: (b, 0, 0))

    out_shape = (
        jax.ShapeDtypeStruct((B, NODES, 1), jnp.float32),   # active-node mask
        jax.ShapeDtypeStruct((B, 1, 1), jnp.float32),       # per-graph KL partial sum
        jax.ShapeDtypeStruct((B, 2, 2), jnp.float32),       # per-graph S^T A S
        jax.ShapeDtypeStruct((B, 1, H), jnp.float32),       # graph embedding
        jax.ShapeDtypeStruct((B, 1, P), jnp.float32),       # prototype squared distances
        jax.ShapeDtypeStruct((B, 1, P), jnp.float32),       # similarity matrix
        jax.ShapeDtypeStruct((B, 1, C), jnp.float32),       # logits
        jax.ShapeDtypeStruct((B, 1, C), jnp.float32),       # probs
    )
    out_specs = (
        per_graph_3d(NODES, 1),
        per_graph_3d(1, 1),
        per_graph_3d(2, 2),
        per_graph_3d(1, H),
        per_graph_3d(1, P),
        per_graph_3d(1, P),
        per_graph_3d(1, C),
        per_graph_3d(1, C),
    )
    in_specs = [
        per_graph_3d(NODES, NODES),       # A diagonal block for graph b
        per_graph_3d(NODES, F),           # X rows for graph b
        _rep2(w0), _rep2(b0), _rep2(w1), _rep2(b1), _rep2(w2), _rep2(b2),
        _rep2(wa1), _rep2(ba1), _rep2(wa2), _rep2(ba2),
        _rep2(proto), _rep2(lastw),
    ]

    (mask, kl_parts, conn_parts, gemb,
     dist, sim, logits, probs) = pl.pallas_call(
        _fused_gnn_kernel,
        grid=(B,),
        in_specs=in_specs,
        out_specs=out_specs,
        out_shape=out_shape,
        compiler_params=pltpu.CompilerParams(
            dimension_semantics=("parallel",),          # v7x: shard graphs over both TCs
            vmem_limit_bytes=32 * 1024 * 1024),
    )(a_bf, x_bf, w0, b0, w1, b1, w2, b2, wa1, ba1, wa2, ba2, proto, lastw)

    # ---- tiny JAX epilogue (O(B) work, fused by XLA) ----
    kl_loss = jnp.sum(kl_parts) / float(N)                               # true-N normalization
    conn = jnp.sum(conn_parts, axis=0)                                   # global S^T A S  [2,2]
    conn_norm = conn / (jnp.sum(conn, axis=-1, keepdims=True) + _EPS)
    pos_penalty = jnp.sqrt(jnp.sum((conn_norm - jnp.eye(2, dtype=jnp.float32)) ** 2) + _EPS)

    active_mask = mask.reshape(N, 1)
    graph_emb = gemb.reshape(B, H)
    min_distance = dist.reshape(B, P)
    sim_matrix = sim.reshape(B, P)
    logits = logits.reshape(B, C)
    probs = probs.reshape(B, C)

    # matches GnnNets.forward return order:
    # (logits, probs, active_node_index, graph_emb, KL_Loss, pos_penalty, sim_matrix, min_distance)
    return (logits, probs, active_mask, graph_emb,
            kl_loss, pos_penalty, sim_matrix, min_distance)


if __name__ == "__main__":
    key = jax.random.PRNGKey(0)
    k_x, k_adj, k_param = jax.random.split(key, 3)

    B = 2          # graphs in the batch
    NODES = 16     # nodes per graph
    N = B * NODES
    F = 16         # input feature dim
    H = 128        # hidden dim (lane-dense)
    HA = 128       # assignment-head hidden dim (lane-dense)
    P = 6          # prototypes
    C = 2          # output classes

    x = jax.random.normal(k_x, (B, NODES, F), jnp.float32)

    # per-graph random symmetric adjacency with self-loops, D^-1/2 (A+I) D^-1/2 normalized.
    a_rand = (jax.random.uniform(k_adj, (B, NODES, NODES)) < 0.3).astype(jnp.float32)
    a = jnp.maximum(a_rand, jnp.transpose(a_rand, (0, 2, 1)))
    a = a + jnp.eye(NODES, dtype=jnp.float32)[None]
    d_inv_sqrt = 1.0 / jnp.sqrt(jnp.sum(a, axis=-1))
    a_hat = a * d_inv_sqrt[:, :, None] * d_inv_sqrt[:, None, :]

    params = init_params(k_param, F, H, HA, P, C)

    outs = gnn_nets_forward(x, a_hat, params)
    outs = jax.block_until_ready(outs)

    (logits, probs, active_mask, graph_emb,
     kl_loss, pos_penalty, sim_matrix, min_distance) = outs

    assert logits.shape == (B, C) and probs.shape == (B, C)
    assert active_mask.shape == (N, 1) and graph_emb.shape == (B, H)
    assert sim_matrix.shape == (B, P) and min_distance.shape == (B, P)
    assert jnp.all(jnp.isfinite(logits)) and jnp.all(jnp.isfinite(probs))
    assert jnp.isfinite(kl_loss) and jnp.isfinite(pos_penalty)
    assert bool(jnp.allclose(jnp.sum(probs, axis=-1), 1.0, atol=1e-2))
    print("KERNEL_OK")
</pallas_src>

<mosaic_0001>
module attributes {stable_mosaic.version = 11 : i64} {
  func.func @_fused_gnn_kernel(%arg0: i32, %arg1: memref<1x16x16xbf16, #tpu.memory_space<vmem>>, %arg2: memref<1x16x16xbf16, #tpu.memory_space<vmem>>, %arg3: memref<16x128xbf16, #tpu.memory_space<vmem>>, %arg4: memref<1x128xf32, #tpu.memory_space<vmem>>, %arg5: memref<128x128xbf16, #tpu.memory_space<vmem>>, %arg6: memref<1x128xf32, #tpu.memory_space<vmem>>, %arg7: memref<128x128xbf16, #tpu.memory_space<vmem>>, %arg8: memref<1x128xf32, #tpu.memory_space<vmem>>, %arg9: memref<128x128xbf16, #tpu.memory_space<vmem>>, %arg10: memref<1x128xf32, #tpu.memory_space<vmem>>, %arg11: memref<128x2xbf16, #tpu.memory_space<vmem>>, %arg12: memref<1x2xf32, #tpu.memory_space<vmem>>, %arg13: memref<6x128xf32, #tpu.memory_space<vmem>>, %arg14: memref<6x2xf32, #tpu.memory_space<vmem>>, %arg15: memref<1x16x1xf32, #tpu.memory_space<vmem>>, %arg16: memref<1x1x1xf32, #tpu.memory_space<vmem>>, %arg17: memref<1x2x2xf32, #tpu.memory_space<vmem>>, %arg18: memref<1x1x128xf32, #tpu.memory_space<vmem>>, %arg19: memref<1x1x6xf32, #tpu.memory_space<vmem>>, %arg20: memref<1x1x6xf32, #tpu.memory_space<vmem>>, %arg21: memref<1x1x2xf32, #tpu.memory_space<vmem>>, %arg22: memref<1x1x2xf32, #tpu.memory_space<vmem>>) attributes {dimension_semantics = [#tpu.dimension_semantics<parallel>], iteration_bounds = array<i64: 2>, scalar_prefetch = 0 : i64, scratch_operands = 0 : i64, tpu.core_type = #tpu.core_type<tc>, window_params = [{transform_indices = @transform_0, window_bounds = array<i64: 1, 16, 16>}, {transform_indices = @transform_1, window_bounds = array<i64: 1, 16, 16>}, {pipeline_mode = #tpu.pipeline_mode<synchronous>, transform_indices = @transform_2, window_bounds = array<i64: 16, 128>}, {pipeline_mode = #tpu.pipeline_mode<synchronous>, transform_indices = @transform_3, window_bounds = array<i64: 1, 128>}, {pipeline_mode = #tpu.pipeline_mode<synchronous>, transform_indices = @transform_4, window_bounds = array<i64: 128, 128>}, {pipeline_mode = #tpu.pipeline_mode<synchronous>, transform_indices = @transform_5, window_bounds = array<i64: 1, 128>}, {pipeline_mode = #tpu.pipeline_mode<synchronous>, transform_indices = @transform_6, window_bounds = array<i64: 128, 128>}, {pipeline_mode = #tpu.pipeline_mode<synchronous>, transform_indices = @transform_7, window_bounds = array<i64: 1, 128>}, {pipeline_mode = #tpu.pipeline_mode<synchronous>, transform_indices = @transform_8, window_bounds = array<i64: 128, 128>}, {pipeline_mode = #tpu.pipeline_mode<synchronous>, transform_indices = @transform_9, window_bounds = array<i64: 1, 128>}, {pipeline_mode = #tpu.pipeline_mode<synchronous>, transform_indices = @transform_10, window_bounds = array<i64: 128, 2>}, {pipeline_mode = #tpu.pipeline_mode<synchronous>, transform_indices = @transform_11, window_bounds = array<i64: 1, 2>}, {pipeline_mode = #tpu.pipeline_mode<synchronous>, transform_indices = @transform_12, window_bounds = array<i64: 6, 128>}, {pipeline_mode = #tpu.pipeline_mode<synchronous>, transform_indices = @transform_13, window_bounds = array<i64: 6, 2>}, {transform_indices = @transform_14, window_bounds = array<i64: 1, 16, 1>}, {transform_indices = @transform_15, window_bounds = array<i64: 1, 1, 1>}, {transform_indices = @transform_16, window_bounds = array<i64: 1, 2, 2>}, {transform_indices = @transform_17, window_bounds = array<i64: 1, 1, 128>}, {transform_indices = @transform_18, window_bounds = array<i64: 1, 1, 6>}, {transform_indices = @transform_19, window_bounds = array<i64: 1, 1, 6>}, {transform_indices = @transform_20, window_bounds = array<i64: 1, 1, 2>}, {transform_indices = @transform_21, window_bounds = array<i64: 1, 1, 2>}]} {
    %c0 = arith.constant 0 : index
    %c0_0 = arith.constant 0 : index
    %c0_1 = arith.constant 0 : index
    %0 = vector.load %arg1[%c0, %c0_0, %c0_1] : memref<1x16x16xbf16, #tpu.memory_space<vmem>>, vector<1x16x16xbf16>
    %1 = vector.shape_cast %0 : vector<1x16x16xbf16> to vector<16x16xbf16>
    %c0_2 = arith.constant 0 : index
    %c0_3 = arith.constant 0 : index
    %c0_4 = arith.constant 0 : index
    %2 = vector.load %arg2[%c0_2, %c0_3, %c0_4] : memref<1x16x16xbf16, #tpu.memory_space<vmem>>, vector<1x16x16xbf16>
    %3 = vector.shape_cast %2 : vector<1x16x16xbf16> to vector<16x16xbf16>
    %c0_5 = arith.constant 0 : index
    %c0_6 = arith.constant 0 : index
    %4 = vector.load %arg3[%c0_5, %c0_6] : memref<16x128xbf16, #tpu.memory_space<vmem>>, vector<16x128xbf16>
    %cst = arith.constant dense<0.000000e+00> : vector<16x128xf32>
    %5 = tpu.matmul %3, %4, %cst {dimension_numbers = #tpu.dot_dimension_numbers<[1], [0], [0], [1], [0, 0, 1, 1], [], []>} : vector<16x16xbf16>, vector<16x128xbf16>, vector<16x128xf32> -> vector<16x128xf32>
    %6 = arith.truncf %5 : vector<16x128xf32> to vector<16x128xbf16>
    %cst_7 = arith.constant dense<0.000000e+00> : vector<16x128xf32>
    %7 = tpu.matmul %1, %6, %cst_7 {dimension_numbers = #tpu.dot_dimension_numbers<[1], [0], [0], [1], [0, 0, 1, 1], [], []>} : vector<16x16xbf16>, vector<16x128xbf16>, vector<16x128xf32> -> vector<16x128xf32>
    %c0_8 = arith.constant 0 : index
    %c0_9 = arith.constant 0 : index
    %8 = vector.load %arg4[%c0_8, %c0_9] : memref<1x128xf32, #tpu.memory_space<vmem>>, vector<1x128xf32>
    %9 = vector.broadcast %8 : vector<1x128xf32> to vector<16x128xf32>
    %10 = arith.addf %7, %9 : vector<16x128xf32>
    %cst_10 = arith.constant 0.000000e+00 : f32
    %11 = vector.broadcast %cst_10 : f32 to vector<16x128xf32>
    %12 = arith.maximumf %10, %11 : vector<16x128xf32>
    %13 = arith.truncf %12 : vector<16x128xf32> to vector<16x128xbf16>
    %c0_11 = arith.constant 0 : index
    %c0_12 = arith.constant 0 : index
    %14 = vector.load %arg5[%c0_11, %c0_12] : memref<128x128xbf16, #tpu.memory_space<vmem>>, vector<128x128xbf16>
    %cst_13 = arith.constant dense<0.000000e+00> : vector<16x128xf32>
    %15 = tpu.matmul %13, %14, %cst_13 {dimension_numbers = #tpu.dot_dimension_numbers<[1], [0], [0], [1], [0, 0, 1, 1], [], []>} : vector<16x128xbf16>, vector<128x128xbf16>, vector<16x128xf32> -> vector<16x128xf32>
    %16 = arith.truncf %15 : vector<16x128xf32> to vector<16x128xbf16>
    %cst_14 = arith.constant dense<0.000000e+00> : vector<16x128xf32>
    %17 = tpu.matmul %1, %16, %cst_14 {dimension_numbers = #tpu.dot_dimension_numbers<[1], [0], [0], [1], [0, 0, 1, 1], [], []>} : vector<16x16xbf16>, vector<16x128xbf16>, vector<16x128xf32> -> vector<16x128xf32>
    %c0_15 = arith.constant 0 : index
    %c0_16 = arith.constant 0 : index
    %18 = vector.load %arg6[%c0_15, %c0_16] : memref<1x128xf32, #tpu.memory_space<vmem>>, vector<1x128xf32>
    %19 = vector.broadcast %18 : vector<1x128xf32> to vector<16x128xf32>
    %20 = arith.addf %17, %19 : vector<16x128xf32>
    %cst_17 = arith.constant 0.000000e+00 : f32
    %21 = vector.broadcast %cst_17 : f32 to vector<16x128xf32>
    %22 = arith.maximumf %20, %21 : vector<16x128xf32>
    %23 = arith.truncf %22 : vector<16x128xf32> to vector<16x128xbf16>
    %c0_18 = arith.constant 0 : index
    %c0_19 = arith.constant 0 : index
    %24 = vector.load %arg7[%c0_18, %c0_19] : memref<128x128xbf16, #tpu.memory_space<vmem>>, vector<128x128xbf16>
    %cst_20 = arith.constant dense<0.000000e+00> : vector<16x128xf32>
    %25 = tpu.matmul %23, %24, %cst_20 {dimension_numbers = #tpu.dot_dimension_numbers<[1], [0], [0], [1], [0, 0, 1, 1], [], []>} : vector<16x128xbf16>, vector<128x128xbf16>, vector<16x128xf32> -> vector<16x128xf32>
    %26 = arith.truncf %25 : vector<16x128xf32> to vector<16x128xbf16>
    %cst_21 = arith.constant dense<0.000000e+00> : vector<16x128xf32>
    %27 = tpu.matmul %1, %26, %cst_21 {dimension_numbers = #tpu.dot_dimension_numbers<[1], [0], [0], [1], [0, 0, 1, 1], [], []>} : vector<16x16xbf16>, vector<16x128xbf16>, vector<16x128xf32> -> vector<16x128xf32>
    %c0_22 = arith.constant 0 : index
    %c0_23 = arith.constant 0 : index
    %28 = vector.load %arg8[%c0_22, %c0_23] : memref<1x128xf32, #tpu.memory_space<vmem>>, vector<1x128xf32>
    %29 = vector.broadcast %28 : vector<1x128xf32> to vector<16x128xf32>
    %30 = arith.addf %27, %29 : vector<16x128xf32>
    %cst_24 = arith.constant 0.000000e+00 : f32
    %31 = vector.broadcast %cst_24 : f32 to vector<16x128xf32>
    %32 = arith.maximumf %30, %31 : vector<16x128xf32>
    %33 = arith.truncf %32 : vector<16x128xf32> to vector<16x128xbf16>
    %c0_25 = arith.constant 0 : index
    %c0_26 = arith.constant 0 : index
    %34 = vector.load %arg9[%c0_25, %c0_26] : memref<128x128xbf16, #tpu.memory_space<vmem>>, vector<128x128xbf16>
    %cst_27 = arith.constant dense<0.000000e+00> : vector<16x128xf32>
    %35 = tpu.matmul %33, %34, %cst_27 {dimension_numbers = #tpu.dot_dimension_numbers<[1], [0], [0], [1], [0, 0, 1, 1], [], []>} : vector<16x128xbf16>, vector<128x128xbf16>, vector<16x128xf32> -> vector<16x128xf32>
    %c0_28 = arith.constant 0 : index
    %c0_29 = arith.constant 0 : index
    %36 = vector.load %arg10[%c0_28, %c0_29] : memref<1x128xf32, #tpu.memory_space<vmem>>, vector<1x128xf32>
    %37 = vector.broadcast %36 : vector<1x128xf32> to vector<16x128xf32>
    %38 = arith.addf %35, %37 : vector<16x128xf32>
    %cst_30 = arith.constant 0.000000e+00 : f32
    %39 = vector.broadcast %cst_30 : f32 to vector<16x128xf32>
    %40 = arith.maximumf %38, %39 : vector<16x128xf32>
    %41 = arith.truncf %40 : vector<16x128xf32> to vector<16x128xbf16>
    %c0_31 = arith.constant 0 : index
    %c0_32 = arith.constant 0 : index
    %42 = vector.load %arg11[%c0_31, %c0_32] : memref<128x2xbf16, #tpu.memory_space<vmem>>, vector<128x2xbf16>
    %cst_33 = arith.constant dense<0.000000e+00> : vector<16x2xf32>
    %43 = tpu.matmul %41, %42, %cst_33 {dimension_numbers = #tpu.dot_dimension_numbers<[1], [0], [0], [1], [0, 0, 1, 1], [], []>} : vector<16x128xbf16>, vector<128x2xbf16>, vector<16x2xf32> -> vector<16x2xf32>
    %c0_34 = arith.constant 0 : index
    %c0_35 = arith.constant 0 : index
    %44 = vector.load %arg12[%c0_34, %c0_35] : memref<1x2xf32, #tpu.memory_space<vmem>>, vector<1x2xf32>
    %45 = vector.broadcast %44 : vector<1x2xf32> to vector<16x2xf32>
    %46 = arith.addf %43, %45 : vector<16x2xf32>
    %cst_36 = arith.constant dense<0xFF800000> : vector<16xf32>
    %47 = vector.multi_reduction <maximumf>, %46, %cst_36 [1] : vector<16x2xf32> to vector<16xf32>
    %48 = vector.shape_cast %47 : vector<16xf32> to vector<16x1xf32>
    %49 = vector.broadcast %48 : vector<16x1xf32> to vector<16x2xf32>
    %50 = arith.subf %46, %49 : vector<16x2xf32>
    %51 = math.exp %50 : vector<16x2xf32>
    %cst_37 = arith.constant dense<0.000000e+00> : vector<16xf32>
    %52 = vector.multi_reduction <add>, %51, %cst_37 [1] : vector<16x2xf32> to vector<16xf32>
    %53 = vector.shape_cast %52 : vector<16xf32> to vector<16x1xf32>
    %54 = tpu.reciprocal %53 {approx = true} : vector<16x1xf32> -> vector<16x1xf32>
    %55 = vector.broadcast %54 : vector<16x1xf32> to vector<16x2xf32>
    %56 = arith.mulf %51, %55 : vector<16x2xf32>
    %57 = vector.extract_strided_slice %56 {offsets = [0, 0], sizes = [16, 1], strides = [1, 1]} : vector<16x2xf32> to vector<16x1xf32>
    %cst_38 = arith.constant 5.000000e-01 : f32
    %58 = vector.broadcast %cst_38 : f32 to vector<16x1xf32>
    %59 = arith.cmpf ogt, %57, %58 : vector<16x1xf32>
    %60 = arith.extui %59 : vector<16x1xi1> to vector<16x1xi32>
    %61 = arith.sitofp %60 : vector<16x1xi32> to vector<16x1xf32>
    %c0_39 = arith.constant 0 : index
    %c0_40 = arith.constant 0 : index
    %c0_41 = arith.constant 0 : index
    %62 = vector.load %arg15[%c0_39, %c0_40, %c0_41] : memref<1x16x1xf32, #tpu.memory_space<vmem>>, vector<1x16x1xf32>
    %63 = vector.shape_cast %62 : vector<1x16x1xf32> to vector<16x1xf32>
    %64 = vector.shape_cast %61 : vector<16x1xf32> to vector<1x16x1xf32>
    tpu.vector_store %arg15[%c0_39, %c0_40, %c0_41], %64 {strides = array<i32>} : memref<1x16x1xf32, #tpu.memory_space<vmem>>, vector<1x16x1xf32>,
    %cst_42 = arith.constant 9.99999993E-9 : f32
    %65 = vector.broadcast %cst_42 : f32 to vector<16x2xf32>
    %66 = arith.addf %56, %65 : vector<16x2xf32>
    %67 = math.log %66 : vector<16x2xf32>
    %cst_43 = arith.constant 5.000000e-01 : f32
    %68 = math.log %cst_43 : f32
    %69 = vector.broadcast %68 : f32 to vector<16x2xf32>
    %70 = arith.subf %67, %69 : vector<16x2xf32>
    %71 = arith.mulf %56, %70 : vector<16x2xf32>
    %cst_44 = arith.constant dense<0.000000e+00> : vector<16xf32>
    %72 = vector.multi_reduction <add>, %71, %cst_44 [1] : vector<16x2xf32> to vector<16xf32>
    %73 = vector.shape_cast %72 : vector<16xf32> to vector<16x1xf32>
    %cst_45 = arith.constant dense<0.000000e+00> : vector<1xf32>
    %74 = vector.multi_reduction <add>, %73, %cst_45 [0] : vector<16x1xf32> to vector<1xf32>
    %75 = vector.shape_cast %74 : vector<1xf32> to vector<1x1xf32>
    %c0_46 = arith.constant 0 : index
    %c0_47 = arith.constant 0 : index
    %c0_48 = arith.constant 0 : index
    %76 = vector.load %arg16[%c0_46, %c0_47, %c0_48] : memref<1x1x1xf32, #tpu.memory_space<vmem>>, vector<1x1x1xf32>
    %77 = vector.shape_cast %76 : vector<1x1x1xf32> to vector<1x1xf32>
    %78 = vector.shape_cast %75 : vector<1x1xf32> to vector<1x1x1xf32>
    tpu.vector_store %arg16[%c0_46, %c0_47, %c0_48], %78 {strides = array<i32>} : memref<1x1x1xf32, #tpu.memory_space<vmem>>, vector<1x1x1xf32>,
    %79 = arith.truncf %56 : vector<16x2xf32> to vector<16x2xbf16>
    %cst_49 = arith.constant dense<0.000000e+00> : vector<16x2xf32>
    %80 = tpu.matmul %1, %79, %cst_49 {dimension_numbers = #tpu.dot_dimension_numbers<[1], [0], [0], [1], [0, 0, 1, 1], [], []>} : vector<16x16xbf16>, vector<16x2xbf16>, vector<16x2xf32> -> vector<16x2xf32>
    %cst_50 = arith.constant dense<0.000000e+00> : vector<2x2xf32>
    %81 = tpu.matmul %56, %80, %cst_50 {dimension_numbers = #tpu.dot_dimension_numbers<[0], [0], [1], [1], [0, 1, 1, 1], [], []>} : vector<16x2xf32>, vector<16x2xf32>, vector<2x2xf32> -> vector<2x2xf32>
    %c0_51 = arith.constant 0 : index
    %c0_52 = arith.constant 0 : index
    %c0_53 = arith.constant 0 : index
    %82 = vector.load %arg17[%c0_51, %c0_52, %c0_53] : memref<1x2x2xf32, #tpu.memory_space<vmem>>, vector<1x2x2xf32>
    %83 = vector.shape_cast %82 : vector<1x2x2xf32> to vector<2x2xf32>
    %84 = vector.shape_cast %81 : vector<2x2xf32> to vector<1x2x2xf32>
    tpu.vector_store %arg17[%c0_51, %c0_52, %c0_53], %84 {strides = array<i32>} : memref<1x2x2xf32, #tpu.memory_space<vmem>>, vector<1x2x2xf32>,
    %85 = vector.broadcast %57 : vector<16x1xf32> to vector<16x128xf32>
    %86 = arith.mulf %32, %85 : vector<16x128xf32>
    %cst_54 = arith.constant dense<0.000000e+00> : vector<128xf32>
    %87 = vector.multi_reduction <add>, %86, %cst_54 [0] : vector<16x128xf32> to vector<128xf32>
    %88 = vector.shape_cast %87 : vector<128xf32> to vector<1x128xf32>
    %cst_55 = arith.constant 1.600000e+01 : f32
    %89 = vector.broadcast %cst_55 : f32 to vector<1x128xf32>
    %90 = arith.divf %88, %89 : vector<1x128xf32>
    %c0_56 = arith.constant 0 : index
    %c0_57 = arith.constant 0 : index
    %c0_58 = arith.constant 0 : index
    %91 = vector.load %arg18[%c0_56, %c0_57, %c0_58] : memref<1x1x128xf32, #tpu.memory_space<vmem>>, vector<1x1x128xf32>
    %92 = vector.shape_cast %91 : vector<1x1x128xf32> to vector<1x128xf32>
    %93 = vector.shape_cast %90 : vector<1x128xf32> to vector<1x1x128xf32>
    tpu.vector_store %arg18[%c0_56, %c0_57, %c0_58], %93 {strides = array<i32>} : memref<1x1x128xf32, #tpu.memory_space<vmem>>, vector<1x1x128xf32>,
    %c0_59 = arith.constant 0 : index
    %c0_60 = arith.constant 0 : index
    %94 = vector.load %arg13[%c0_59, %c0_60] : memref<6x128xf32, #tpu.memory_space<vmem>>, vector<6x128xf32>
    %95 = arith.mulf %90, %90 : vector<1x128xf32>
    %cst_61 = arith.constant dense<0.000000e+00> : vector<1xf32>
    %96 = vector.multi_reduction <add>, %95, %cst_61 [1] : vector<1x128xf32> to vector<1xf32>
    %97 = vector.shape_cast %96 : vector<1xf32> to vector<1x1xf32>
    %cst_62 = arith.constant 1.000000e+00 : f32
    %98 = vector.broadcast %cst_62 : f32 to vector<1x128xf32>
    %99 = arith.mulf %94, %94 : vector<6x128xf32>
    %cst_63 = arith.constant dense<0.000000e+00> : vector<1x6xf32>
    %100 = tpu.matmul %98, %99, %cst_63 {dimension_numbers = #tpu.dot_dimension_numbers<[1], [1], [0], [0], [0, 0, 1, 0], [], []>} : vector<1x128xf32>, vector<6x128xf32>, vector<1x6xf32> -> vector<1x6xf32>
    %cst_64 = arith.constant dense<0.000000e+00> : vector<1x6xf32>
    %101 = tpu.matmul %90, %94, %cst_64 {dimension_numbers = #tpu.dot_dimension_numbers<[1], [1], [0], [0], [0, 0, 1, 0], [], []>} : vector<1x128xf32>, vector<6x128xf32>, vector<1x6xf32> -> vector<1x6xf32>
    %102 = vector.broadcast %97 : vector<1x1xf32> to vector<1x6xf32>
    %103 = arith.addf %102, %100 : vector<1x6xf32>
    %cst_65 = arith.constant 2.000000e+00 : f32
    %104 = vector.broadcast %cst_65 : f32 to vector<1x6xf32>
    %105 = arith.mulf %104, %101 : vector<1x6xf32>
    %106 = arith.subf %103, %105 : vector<1x6xf32>
    %cst_66 = arith.constant 0.000000e+00 : f32
    %107 = vector.broadcast %cst_66 : f32 to vector<1x6xf32>
    %108 = arith.maximumf %106, %107 : vector<1x6xf32>
    %c0_67 = arith.constant 0 : index
    %c0_68 = arith.constant 0 : index
    %c0_69 = arith.constant 0 : index
    %109 = vector.load %arg19[%c0_67, %c0_68, %c0_69] : memref<1x1x6xf32, #tpu.memory_space<vmem>>, vector<1x1x6xf32>
    %110 = vector.shape_cast %109 : vector<1x1x6xf32> to vector<1x6xf32>
    %111 = vector.shape_cast %108 : vector<1x6xf32> to vector<1x1x6xf32>
    tpu.vector_store %arg19[%c0_67, %c0_68, %c0_69], %111 {strides = array<i32>} : memref<1x1x6xf32, #tpu.memory_space<vmem>>, vector<1x1x6xf32>,
    %cst_70 = arith.constant 1.000000e+00 : f32
    %112 = vector.broadcast %cst_70 : f32 to vector<1x6xf32>
    %113 = arith.addf %108, %112 : vector<1x6xf32>
    %cst_71 = arith.constant 9.99999974E-5 : f32
    %114 = vector.broadcast %cst_71 : f32 to vector<1x6xf32>
    %115 = arith.addf %108, %114 : vector<1x6xf32>
    %116 = arith.divf %113, %115 : vector<1x6xf32>
    %117 = math.log %116 : vector<1x6xf32>
    %c0_72 = arith.constant 0 : index
    %c0_73 = arith.constant 0 : index
    %c0_74 = arith.constant 0 : index
    %118 = vector.load %arg20[%c0_72, %c0_73, %c0_74] : memref<1x1x6xf32, #tpu.memory_space<vmem>>, vector<1x1x6xf32>
    %119 = vector.shape_cast %118 : vector<1x1x6xf32> to vector<1x6xf32>
    %120 = vector.shape_cast %117 : vector<1x6xf32> to vector<1x1x6xf32>
    tpu.vector_store %arg20[%c0_72, %c0_73, %c0_74], %120 {strides = array<i32>} : memref<1x1x6xf32, #tpu.memory_space<vmem>>, vector<1x1x6xf32>,
    %c0_75 = arith.constant 0 : index
    %c0_76 = arith.constant 0 : index
    %121 = vector.load %arg14[%c0_75, %c0_76] : memref<6x2xf32, #tpu.memory_space<vmem>>, vector<6x2xf32>
    %cst_77 = arith.constant dense<0.000000e+00> : vector<1x2xf32>
    %122 = tpu.matmul %117, %121, %cst_77 {dimension_numbers = #tpu.dot_dimension_numbers<[1], [0], [0], [1], [0, 0, 1, 1], [], []>} : vector<1x6xf32>, vector<6x2xf32>, vector<1x2xf32> -> vector<1x2xf32>
    %c0_78 = arith.constant 0 : index
    %c0_79 = arith.constant 0 : index
    %c0_80 = arith.constant 0 : index
    %123 = vector.load %arg21[%c0_78, %c0_79, %c0_80] : memref<1x1x2xf32, #tpu.memory_space<vmem>>, vector<1x1x2xf32>
    %124 = vector.shape_cast %123 : vector<1x1x2xf32> to vector<1x2xf32>
    %125 = vector.shape_cast %122 : vector<1x2xf32> to vector<1x1x2xf32>
    tpu.vector_store %arg21[%c0_78, %c0_79, %c0_80], %125 {strides = array<i32>} : memref<1x1x2xf32, #tpu.memory_space<vmem>>, vector<1x1x2xf32>,
    %cst_81 = arith.constant dense<0xFF800000> : vector<1xf32>
    %126 = vector.multi_reduction <maximumf>, %122, %cst_81 [1] : vector<1x2xf32> to vector<1xf32>
    %127 = vector.shape_cast %126 : vector<1xf32> to vector<1x1xf32>
    %128 = vector.broadcast %127 : vector<1x1xf32> to vector<1x2xf32>
    %129 = arith.subf %122, %128 : vector<1x2xf32>
    %130 = math.exp %129 : vector<1x2xf32>
    %cst_82 = arith.constant dense<0.000000e+00> : vector<1xf32>
    %131 = vector.multi_reduction <add>, %130, %cst_82 [1] : vector<1x2xf32> to vector<1xf32>
    %132 = vector.shape_cast %131 : vector<1xf32> to vector<1x1xf32>
    %133 = tpu.reciprocal %132 {approx = true} : vector<1x1xf32> -> vector<1x1xf32>
    %134 = vector.broadcast %133 : vector<1x1xf32> to vector<1x2xf32>
    %135 = arith.mulf %130, %134 : vector<1x2xf32>
    %c0_83 = arith.constant 0 : index
    %c0_84 = arith.constant 0 : index
    %c0_85 = arith.constant 0 : index
    %136 = vector.load %arg22[%c0_83, %c0_84, %c0_85] : memref<1x1x2xf32, #tpu.memory_space<vmem>>, vector<1x1x2xf32>
    %137 = vector.shape_cast %136 : vector<1x1x2xf32> to vector<1x2xf32>
    %138 = vector.shape_cast %135 : vector<1x2xf32> to vector<1x1x2xf32>
    tpu.vector_store %arg22[%c0_83, %c0_84, %c0_85], %138 {strides = array<i32>} : memref<1x1x2xf32, #tpu.memory_space<vmem>>, vector<1x1x2xf32>,
    return
  }
  func.func @transform_0(%arg0: i32) -> (i32, i32, i32) {
    %c0_i32 = arith.constant 0 : i32
    %c0_i32_0 = arith.constant 0 : i32
    %c0_i32_1 = arith.constant 0 : i32
    return %arg0, %c0_i32, %c0_i32_0 : i32, i32, i32
  }
  func.func @transform_1(%arg0: i32) -> (i32, i32, i32) {
    %c0_i32 = arith.constant 0 : i32
    %c0_i32_0 = arith.constant 0 : i32
    %c0_i32_1 = arith.constant 0 : i32
    return %arg0, %c0_i32, %c0_i32_0 : i32, i32, i32
  }
  func.func @transform_2(%arg0: i32) -> (i32, i32) {
    %c0_i32 = arith.constant 0 : i32
    %c0_i32_0 = arith.constant 0 : i32
    %c0_i32_1 = arith.constant 0 : i32
    return %c0_i32, %c0_i32_0 : i32, i32
  }
  func.func @transform_3(%arg0: i32) -> (i32, i32) {
    %c0_i32 = arith.constant 0 : i32
    %c0_i32_0 = arith.constant 0 : i32
    %c0_i32_1 = arith.constant 0 : i32
    return %c0_i32, %c0_i32_0 : i32, i32
  }
  func.func @transform_4(%arg0: i32) -> (i32, i32) {
    %c0_i32 = arith.constant 0 : i32
    %c0_i32_0 = arith.constant 0 : i32
    %c0_i32_1 = arith.constant 0 : i32
    return %c0_i32, %c0_i32_0 : i32, i32
  }
  func.func @transform_5(%arg0: i32) -> (i32, i32) {
    %c0_i32 = arith.constant 0 : i32
    %c0_i32_0 = arith.constant 0 : i32
    %c0_i32_1 = arith.constant 0 : i32
    return %c0_i32, %c0_i32_0 : i32, i32
  }
  func.func @transform_6(%arg0: i32) -> (i32, i32) {
    %c0_i32 = arith.constant 0 : i32
    %c0_i32_0 = arith.constant 0 : i32
    %c0_i32_1 = arith.constant 0 : i32
    return %c0_i32, %c0_i32_0 : i32, i32
  }
  func.func @transform_7(%arg0: i32) -> (i32, i32) {
    %c0_i32 = arith.constant 0 : i32
    %c0_i32_0 = arith.constant 0 : i32
    %c0_i32_1 = arith.constant 0 : i32
    return %c0_i32, %c0_i32_0 : i32, i32
  }
  func.func @transform_8(%arg0: i32) -> (i32, i32) {
    %c0_i32 = arith.constant 0 : i32
    %c0_i32_0 = arith.constant 0 : i32
    %c0_i32_1 = arith.constant 0 : i32
    return %c0_i32, %c0_i32_0 : i32, i32
  }
  func.func @transform_9(%arg0: i32) -> (i32, i32) {
    %c0_i32 = arith.constant 0 : i32
    %c0_i32_0 = arith.constant 0 : i32
    %c0_i32_1 = arith.constant 0 : i32
    return %c0_i32, %c0_i32_0 : i32, i32
  }
  func.func @transform_10(%arg0: i32) -> (i32, i32) {
    %c0_i32 = arith.constant 0 : i32
    %c0_i32_0 = arith.constant 0 : i32
    %c0_i32_1 = arith.constant 0 : i32
    return %c0_i32, %c0_i32_0 : i32, i32
  }
  func.func @transform_11(%arg0: i32) -> (i32, i32) {
    %c0_i32 = arith.constant 0 : i32
    %c0_i32_0 = arith.constant 0 : i32
    %c0_i32_1 = arith.constant 0 : i32
    return %c0_i32, %c0_i32_0 : i32, i32
  }
  func.func @transform_12(%arg0: i32) -> (i32, i32) {
    %c0_i32 = arith.constant 0 : i32
    %c0_i32_0 = arith.constant 0 : i32
    %c0_i32_1 = arith.constant 0 : i32
    return %c0_i32, %c0_i32_0 : i32, i32
  }
  func.func @transform_13(%arg0: i32) -> (i32, i32) {
    %c0_i32 = arith.constant 0 : i32
    %c0_i32_0 = arith.constant 0 : i32
    %c0_i32_1 = arith.constant 0 : i32
    return %c0_i32, %c0_i32_0 : i32, i32
  }
  func.func @transform_14(%arg0: i32) -> (i32, i32, i32) {
    %c0_i32 = arith.constant 0 : i32
    %c0_i32_0 = arith.constant 0 : i32
    %c0_i32_1 = arith.constant 0 : i32
    return %arg0, %c0_i32, %c0_i32_0 : i32, i32, i32
  }
  func.func @transform_15(%arg0: i32) -> (i32, i32, i32) {
    %c0_i32 = arith.constant 0 : i32
    %c0_i32_0 = arith.constant 0 : i32
    %c0_i32_1 = arith.constant 0 : i32
    return %arg0, %c0_i32, %c0_i32_0 : i32, i32, i32
  }
  func.func @transform_16(%arg0: i32) -> (i32, i32, i32) {
    %c0_i32 = arith.constant 0 : i32
    %c0_i32_0 = arith.constant 0 : i32
    %c0_i32_1 = arith.constant 0 : i32
    return %arg0, %c0_i32, %c0_i32_0 : i32, i32, i32
  }
  func.func @transform_17(%arg0: i32) -> (i32, i32, i32) {
    %c0_i32 = arith.constant 0 : i32
    %c0_i32_0 = arith.constant 0 : i32
    %c0_i32_1 = arith.constant 0 : i32
    return %arg0, %c0_i32, %c0_i32_0 : i32, i32, i32
  }
  func.func @transform_18(%arg0: i32) -> (i32, i32, i32) {
    %c0_i32 = arith.constant 0 : i32
    %c0_i32_0 = arith.constant 0 : i32
    %c0_i32_1 = arith.constant 0 : i32
    return %arg0, %c0_i32, %c0_i32_0 : i32, i32, i32
  }
  func.func @transform_19(%arg0: i32) -> (i32, i32, i32) {
    %c0_i32 = arith.constant 0 : i32
    %c0_i32_0 = arith.constant 0 : i32
    %c0_i32_1 = arith.constant 0 : i32
    return %arg0, %c0_i32, %c0_i32_0 : i32, i32, i32
  }
  func.func @transform_20(%arg0: i32) -> (i32, i32, i32) {
    %c0_i32 = arith.constant 0 : i32
    %c0_i32_0 = arith.constant 0 : i32
    %c0_i32_1 = arith.constant 0 : i32
    return %arg0, %c0_i32, %c0_i32_0 : i32, i32, i32
  }
  func.func @transform_21(%arg0: i32) -> (i32, i32, i32) {
    %c0_i32 = arith.constant 0 : i32
    %c0_i32_0 = arith.constant 0 : i32
    %c0_i32_1 = arith.constant 0 : i32
    return %arg0, %c0_i32, %c0_i32_0 : i32, i32, i32
  }
}

</mosaic_0001>

<llo_original>
// kernel: gnn_nets_forward.1
$region0: #{gnn_nets_forward.1}
  #allocation0 [shape = 'u32[]', space=smem, size = 0x4, offset = 0x4, fixed_abs, tag = 'smem constant byte address 0x4 - core index']
  #allocation1 [shape = 'u32[72,128]{1,0:T(1,128)}', space=vmem, size = 0x9000, scoped, tag = 'internal scratch']
  %s0 = inlined_call_operand.vmem [shape: bf16[2,16,16], index: 0, kind: input, shape index: {}]
  %s1 = inlined_call_operand.vmem [shape: bf16[2,16,16], index: 1, kind: input, shape index: {}]
  %s2 = inlined_call_operand.vmem [shape: bf16[16,128], index: 2, kind: input, shape index: {}]
  %s3 = inlined_call_operand.vmem [shape: f32[1,128], index: 3, kind: input, shape index: {}]
  %s4 = inlined_call_operand.vmem [shape: bf16[128,128], index: 4, kind: input, shape index: {}]
  %s5 = inlined_call_operand.vmem [shape: f32[1,128], index: 5, kind: input, shape index: {}]
  %s6 = inlined_call_operand.vmem [shape: bf16[128,128], index: 6, kind: input, shape index: {}]
  %s7 = inlined_call_operand.vmem [shape: f32[1,128], index: 7, kind: input, shape index: {}]
  %s8 = inlined_call_operand.hbm [shape: bf16[128,128], index: 8, kind: input, shape index: {}]
  %s9 = inlined_call_operand.hbm [shape: f32[1,128], index: 9, kind: input, shape index: {}]
  %s10 = inlined_call_operand.vmem [shape: bf16[128,2], index: 10, kind: input, shape index: {}]
  %s11 = inlined_call_operand.hbm [shape: f32[1,2], index: 11, kind: input, shape index: {}]
  %s12 = inlined_call_operand.vmem [shape: f32[6,128], index: 12, kind: input, shape index: {}]
  %s13 = inlined_call_operand.vmem [shape: f32[6,2], index: 13, kind: input, shape index: {}]
  %s14 = inlined_call_operand.vmem [shape: f32[2,16,1], index: 14, kind: output, shape index: {0}]
  %s15 = inlined_call_operand.vmem [shape: f32[2,1,1], index: 15, kind: output, shape index: {1}]
  %s16 = inlined_call_operand.vmem [shape: f32[2,2,2], index: 16, kind: output, shape index: {2}]
  %s17 = inlined_call_operand.hbm [shape: f32[2,1,128], index: 17, kind: output, shape index: {3}]
  %s18 = inlined_call_operand.hbm [shape: f32[2,1,6], index: 18, kind: output, shape index: {4}]
  %s19 = inlined_call_operand.hbm [shape: f32[2,1,6], index: 19, kind: output, shape index: {5}]
  %s20 = inlined_call_operand.hbm [shape: f32[2,1,2], index: 20, kind: output, shape index: {6}]
  %s21 = inlined_call_operand.hbm [shape: f32[2,1,2], index: 21, kind: output, shape index: {7}]
  %22 = xla_tuple %s14, %s15, %s16, %s17, %s18, %s19, %s20, %s21
  %s23 = sld [smem:[#allocation0]]
  $region157: #{gnn_nets_forward.1} parent=0
    _
  %s25 = ssub.s32 1, %s23
  %s26 = scalar_select 0, %s25, %s23
  $region1: #{gnn_nets_forward.1} parent=0
    #allocation2 [shape = 'u8[32768]{0}', space=vmem, size = 0x8000, scoped, tag = 'input window, operand 8, single buffered']
    #allocation3 [shape = 's32[2]{0}', space=sflag, size = 0x8, scoped, tag = 'scoped memory for gnn_nets_forward.1']
    #allocation4 [shape = 's32[2]{0}', space=sflag, size = 0x8, scoped, tag = 'scoped memory for gnn_nets_forward.1']
    #allocation5 [shape = 'u8[512]{0}', space=vmem, size = 0x400, scoped, tag = 'input window, operand 9, single buffered']
    #allocation6 [shape = 's32[1]{0}', space=sflag, size = 0x4, scoped, tag = 'scoped memory for gnn_nets_forward.1']
    #allocation7 [shape = 'u8[512]{0}', space=vmem, size = 0x400, scoped, tag = 'input window, operand 11, single buffered']
    #allocation8 [shape = 'u8[1024]{0}', space=vmem, size = 0x400, scoped, tag = 'output window, operand 3']
    #allocation9 [shape = 'u8[1024]{0}', space=vmem, size = 0x400, scoped, tag = 'output window, operand 4']
    #allocation10 [shape = 's32[2]{0}', space=sflag, size = 0x8, scoped, tag = 'scoped memory for gnn_nets_forward.1']
    #allocation11 [shape = 'u8[1024]{0}', space=vmem, size = 0x400, scoped, tag = 'output window, operand 5']
    #allocation12 [shape = 'u8[1024]{0}', space=vmem, size = 0x400, scoped, tag = 'output window, operand 6']
    #allocation13 [shape = 's32[2]{0}', space=sflag, size = 0x8, scoped, tag = 'scoped memory for gnn_nets_forward.1']
    #allocation14 [shape = 'u8[1024]{0}', space=vmem, size = 0x400, scoped, tag = 'output window, operand 7']
    %27 = vsyncpa [#allocation3], 0
    %28 = vsyncpa [#allocation6], 0
    %29 = vsyncpa [#allocation4], 0
    %s30 = scalar_lea.sflag [#allocation4], 1
    %31 = vsyncpa %s30, 0
    %32 = vsyncpa [#allocation10], 0
    %s33 = scalar_lea.sflag [#allocation10], 1
    %34 = vsyncpa %s33, 0
    %35 = vsyncpa [#allocation13], 0
    %s36 = scalar_lea.sflag [#allocation13], 1
    %37 = vsyncpa %s36, 0
    loop: start=0, step=1, limit=4
    $region2: #{gnn_nets_forward.1} parent=1 // loop_pre_header
      _
    $region3: #{gnn_nets_forward.1} parent=1 // loop_header
      %s39 = sphi 0, %s43
      %p40 = scmp.ge.s32.totalorder %s39, 4
      %s49 = sphi 0, %s51
      %s52 = sphi 0, %s49
      %s53 = sphi 0, %s52
      %s69 = sphi 0, %s53
      %s75 = sphi 0, %s77
      %s78 = sphi 0, %s75
      %s79 = sphi 0, %s78
      %s95 = sphi 0, %s79
      %s99 = sphi 0, %s99
      %s101 = sphi 0, %s99
      %s102 = sphi 0, %s101
      %s116 = sphi 0, %s102
      %s120 = sphi 0, %s120
      %s122 = sphi 0, %s120
      %s123 = sphi 0, %s122
      %s137 = sphi 0, %s123
      %s141 = sphi 0, %s141
      %s143 = sphi 0, %s141
      %s144 = sphi 0, %s143
      %s158 = sphi 0, %s144
      %s162 = sphi 0, %s162
      %s164 = sphi 0, %s162
      %s165 = sphi 0, %s164
      %s179 = sphi 0, %s165
      %s183 = sphi 0, %s183
      %s185 = sphi 0, %s183
      %s186 = sphi 0, %s185
      %s200 = sphi 0, %s186
      %s204 = sphi 0, %s204
      %s206 = sphi 0, %s204
      %s207 = sphi 0, %s206
      %s221 = sphi 0, %s207
      %s225 = sphi 0, %s225
      %s227 = sphi 0, %s225
      %s228 = sphi 0, %s227
      %s242 = sphi 0, %s228
      %s246 = sphi 0, %s246
      %s248 = sphi 0, %s246
      %s249 = sphi 0, %s248
      %s263 = sphi 0, %s249
      %s267 = sphi 0, %s267
      %s269 = sphi 0, %s267
      %s270 = sphi 0, %s269
      %s284 = sphi 0, %s270
      %s288 = sphi 0, %s288
      %s290 = sphi 0, %s288
      %s291 = sphi 0, %s290
      %s305 = sphi 0, %s291
      %s309 = sphi 0, %s309
      %s311 = sphi 0, %s309
      %s312 = sphi 0, %s311
      %s326 = sphi 0, %s312
      %s330 = sphi 0, %s330
      %s332 = sphi 0, %s330
      %s333 = sphi 0, %s332
      %s347 = sphi 0, %s333
      %s353 = sphi 0, %s355
      %s356 = sphi 0, %s353
      %s357 = sphi 0, %s356
      %s373 = sphi 0, %s357
      %s379 = sphi 0, %s381
      %s382 = sphi 0, %s379
      %s383 = sphi 0, %s382
      %s399 = sphi 0, %s383
      %s405 = sphi 0, %s407
      %s408 = sphi 0, %s405
      %s409 = sphi 0, %s408
      %s425 = sphi 0, %s409
      %s431 = sphi 0, %s433
      %s434 = sphi 0, %s431
      %s435 = sphi 0, %s434
      %s451 = sphi 0, %s435
      %s457 = sphi 0, %s459
      %s460 = sphi 0, %s457
      %s461 = sphi 0, %s460
      %s477 = sphi 0, %s461
      %s483 = sphi 0, %s485
      %s486 = sphi 0, %s483
      %s487 = sphi 0, %s486
      %s503 = sphi 0, %s487
      %s509 = sphi 0, %s511
      %s512 = sphi 0, %s509
      %s513 = sphi 0, %s512
      %s529 = sphi 0, %s513
      %s535 = sphi 0, %s537
      %s538 = sphi 0, %s535
      %s539 = sphi 0, %s538
      %s555 = sphi 0, %s539
    $region4: #{gnn_nets_forward.1} parent=1 // loop_header_branch
      %42 = sbr.rel (%p40) target = $region8
    $region5: #{gnn_nets_forward.1} parent=1 // loop_body
      %s44 = ssub.s32 %s39, 1
      %s45 = ssub.s32 %s39, 2
      %s46 = sadd.s32 %s39, 1
      %s47 = ssub.s32 %s39, %s46
      %p48 = scmp.eq.s32.totalorder %s47, 0
      %s50 = sadd.s32 %s49, 1
      %s51 = scalar_select %p48, %s49, %s50
      %p54 = pneg %p48
      %p55 = scmp.eq.s32.totalorder %s39, 1
      %p56 = por %p54, %p55
      %p57 = scmp.ne.s32.totalorder %s49, %s52
      %p58 = scmp.eq.s32.totalorder %s39, 0
      %p59 = por %p57, %p58
      %p60 = scmp.ne.s32.totalorder %s49, %s52
      %p61 = scmp.eq.s32.totalorder %s44, 1
      %p62 = por %p60, %p61
      %p63 = scmp.ne.s32.totalorder %s52, %s53
      %p64 = scmp.eq.s32.totalorder %s44, 0
      %p65 = por %p63, %p64
      %p66 = scmp.ne.s32.totalorder %s52, %s53
      %p67 = scmp.eq.s32.totalorder %s45, 1
      %p68 = por %p66, %p67
      %p70 = scmp.ne.s32.totalorder %s53, %s69
      %p71 = scmp.eq.s32.totalorder %s45, 0
      %p72 = por %p70, %p71
      %s73 = ssub.s32 %s39, %s46
      %p74 = scmp.eq.s32.totalorder %s73, 0
      %s76 = sadd.s32 %s75, 1
      %s77 = scalar_select %p74, %s75, %s76
      %p80 = pneg %p74
      %p81 = scmp.eq.s32.totalorder %s39, 1
      %p82 = por %p80, %p81
      %p83 = scmp.ne.s32.totalorder %s75, %s78
      %p84 = scmp.eq.s32.totalorder %s39, 0
      %p85 = por %p83, %p84
      %p86 = scmp.ne.s32.totalorder %s75, %s78
      %p87 = scmp.eq.s32.totalorder %s44, 1
      %p88 = por %p86, %p87
      %p89 = scmp.ne.s32.totalorder %s78, %s79
      %p90 = scmp.eq.s32.totalorder %s44, 0
      %p91 = por %p89, %p90
      %p92 = scmp.ne.s32.totalorder %s78, %s79
      %p93 = scmp.eq.s32.totalorder %s45, 1
      %p94 = por %p92, %p93
      %p96 = scmp.ne.s32.totalorder %s79, %s95
      %p97 = scmp.eq.s32.totalorder %s45, 0
      %p98 = por %p96, %p97
      %s100 = sadd.s32 %s99, 1
      %p103 = scmp.eq.s32.totalorder %s39, 1
      %p104 = scmp.ne.s32.totalorder %s99, %s101
      %p105 = scmp.eq.s32.totalorder %s39, 0
      %p106 = por %p104, %p105
      %p107 = scmp.ne.s32.totalorder %s99, %s101
      %p108 = scmp.eq.s32.totalorder %s44, 1
      %p109 = por %p107, %p108
      %p110 = scmp.ne.s32.totalorder %s101, %s102
      %p111 = scmp.eq.s32.totalorder %s44, 0
      %p112 = por %p110, %p111
      %p113 = scmp.ne.s32.totalorder %s101, %s102
      %p114 = scmp.eq.s32.totalorder %s45, 1
      %p115 = por %p113, %p114
      %p117 = scmp.ne.s32.totalorder %s102, %s116
      %p118 = scmp.eq.s32.totalorder %s45, 0
      %p119 = por %p117, %p118
      %s121 = sadd.s32 %s120, 1
      %p124 = scmp.eq.s32.totalorder %s39, 1
      %p125 = scmp.ne.s32.totalorder %s120, %s122
      %p126 = scmp.eq.s32.totalorder %s39, 0
      %p127 = por %p125, %p126
      %p128 = scmp.ne.s32.totalorder %s120, %s122
      %p129 = scmp.eq.s32.totalorder %s44, 1
      %p130 = por %p128, %p129
      %p131 = scmp.ne.s32.totalorder %s122, %s123
      %p132 = scmp.eq.s32.totalorder %s44, 0
      %p133 = por %p131, %p132
      %p134 = scmp.ne.s32.totalorder %s122, %s123
      %p135 = scmp.eq.s32.totalorder %s45, 1
      %p136 = por %p134, %p135
      %p138 = scmp.ne.s32.totalorder %s123, %s137
      %p139 = scmp.eq.s32.totalorder %s45, 0
      %p140 = por %p138, %p139
      %s142 = sadd.s32 %s141, 1
      %p145 = scmp.eq.s32.totalorder %s39, 1
      %p146 = scmp.ne.s32.totalorder %s141, %s143
      %p147 = scmp.eq.s32.totalorder %s39, 0
      %p148 = por %p146, %p147
      %p149 = scmp.ne.s32.totalorder %s141, %s143
      %p150 = scmp.eq.s32.totalorder %s44, 1
      %p151 = por %p149, %p150
      %p152 = scmp.ne.s32.totalorder %s143, %s144
      %p153 = scmp.eq.s32.totalorder %s44, 0
      %p154 = por %p152, %p153
      %p155 = scmp.ne.s32.totalorder %s143, %s144
      %p156 = scmp.eq.s32.totalorder %s45, 1
      %p157 = por %p155, %p156
      %p159 = scmp.ne.s32.totalorder %s144, %s158
      %p160 = scmp.eq.s32.totalorder %s45, 0
      %p161 = por %p159, %p160
      %s163 = sadd.s32 %s162, 1
      %p166 = scmp.eq.s32.totalorder %s39, 1
      %p167 = scmp.ne.s32.totalorder %s162, %s164
      %p168 = scmp.eq.s32.totalorder %s39, 0
      %p169 = por %p167, %p168
      %p170 = scmp.ne.s32.totalorder %s162, %s164
      %p171 = scmp.eq.s32.totalorder %s44, 1
      %p172 = por %p170, %p171
      %p173 = scmp.ne.s32.totalorder %s164, %s165
      %p174 = scmp.eq.s32.totalorder %s44, 0
      %p175 = por %p173, %p174
      %p176 = scmp.ne.s32.totalorder %s164, %s165
      %p177 = scmp.eq.s32.totalorder %s45, 1
      %p178 = por %p176, %p177
      %p180 = scmp.ne.s32.totalorder %s165, %s179
      %p181 = scmp.eq.s32.totalorder %s45, 0
      %p182 = por %p180, %p181
      %s184 = sadd.s32 %s183, 1
      %p187 = scmp.eq.s32.totalorder %s39, 1
      %p188 = scmp.ne.s32.totalorder %s183, %s185
      %p189 = scmp.eq.s32.totalorder %s39, 0
      %p190 = por %p188, %p189
      %p191 = scmp.ne.s32.totalorder %s183, %s185
      %p192 = scmp.eq.s32.totalorder %s44, 1
      %p193 = por %p191, %p192
      %p194 = scmp.ne.s32.totalorder %s185, %s186
      %p195 = scmp.eq.s32.totalorder %s44, 0
      %p196 = por %p194, %p195
      %p197 = scmp.ne.s32.totalorder %s185, %s186
      %p198 = scmp.eq.s32.totalorder %s45, 1
      %p199 = por %p197, %p198
      %p201 = scmp.ne.s32.totalorder %s186, %s200
      %p202 = scmp.eq.s32.totalorder %s45, 0
      %p203 = por %p201, %p202
      %s205 = sadd.s32 %s204, 1
      %p208 = scmp.eq.s32.totalorder %s39, 1
      %p209 = scmp.ne.s32.totalorder %s204, %s206
      %p210 = scmp.eq.s32.totalorder %s39, 0
      %p211 = por %p209, %p210
      %p212 = scmp.ne.s32.totalorder %s204, %s206
      %p213 = scmp.eq.s32.totalorder %s44, 1
      %p214 = por %p212, %p213
      %p215 = scmp.ne.s32.totalorder %s206, %s207
      %p216 = scmp.eq.s32.totalorder %s44, 0
      %p217 = por %p215, %p216
      %p218 = scmp.ne.s32.totalorder %s206, %s207
      %p219 = scmp.eq.s32.totalorder %s45, 1
      %p220 = por %p218, %p219
      %p222 = scmp.ne.s32.totalorder %s207, %s221
      %p223 = scmp.eq.s32.totalorder %s45, 0
      %p224 = por %p222, %p223
      %s226 = sadd.s32 %s225, 1
      %p229 = scmp.eq.s32.totalorder %s39, 1
      %p230 = scmp.ne.s32.totalorder %s225, %s227
      %p231 = scmp.eq.s32.totalorder %s39, 0
      %p232 = por %p230, %p231
      %p233 = scmp.ne.s32.totalorder %s225, %s227
      %p234 = scmp.eq.s32.totalorder %s44, 1
      %p235 = por %p233, %p234
      %p236 = scmp.ne.s32.totalorder %s227, %s228
      %p237 = scmp.eq.s32.totalorder %s44, 0
      %p238 = por %p236, %p237
      %p239 = scmp.ne.s32.totalorder %s227, %s228
      %p240 = scmp.eq.s32.totalorder %s45, 1
      %p241 = por %p239, %p240
      %p243 = scmp.ne.s32.totalorder %s228, %s242
      %p244 = scmp.eq.s32.totalorder %s45, 0
      %p245 = por %p243, %p244
      %s247 = sadd.s32 %s246, 1
      %p250 = scmp.eq.s32.totalorder %s39, 1
      %p251 = scmp.ne.s32.totalorder %s246, %s248
      %p252 = scmp.eq.s32.totalorder %s39, 0
      %p253 = por %p251, %p252
      %p254 = scmp.ne.s32.totalorder %s246, %s248
      %p255 = scmp.eq.s32.totalorder %s44, 1
      %p256 = por %p254, %p255
      %p257 = scmp.ne.s32.totalorder %s248, %s249
      %p258 = scmp.eq.s32.totalorder %s44, 0
      %p259 = por %p257, %p258
      %p260 = scmp.ne.s32.totalorder %s248, %s249
      %p261 = scmp.eq.s32.totalorder %s45, 1
      %p262 = por %p260, %p261
      %p264 = scmp.ne.s32.totalorder %s249, %s263
      %p265 = scmp.eq.s32.totalorder %s45, 0
      %p266 = por %p264, %p265
      %s268 = sadd.s32 %s267, 1
      %p271 = scmp.eq.s32.totalorder %s39, 1
      %p272 = scmp.ne.s32.totalorder %s267, %s269
      %p273 = scmp.eq.s32.totalorder %s39, 0
      %p274 = por %p272, %p273
      %p275 = scmp.ne.s32.totalorder %s267, %s269
      %p276 = scmp.eq.s32.totalorder %s44, 1
      %p277 = por %p275, %p276
      %p278 = scmp.ne.s32.totalorder %s269, %s270
      %p279 = scmp.eq.s32.totalorder %s44, 0
      %p280 = por %p278, %p279
      %p281 = scmp.ne.s32.totalorder %s269, %s270
      %p282 = scmp.eq.s32.totalorder %s45, 1
      %p283 = por %p281, %p282
      %p285 = scmp.ne.s32.totalorder %s270, %s284
      %p286 = scmp.eq.s32.totalorder %s45, 0
      %p287 = por %p285, %p286
      %s289 = sadd.s32 %s288, 1
      %p292 = scmp.eq.s32.totalorder %s39, 1
      %p293 = scmp.ne.s32.totalorder %s288, %s290
      %p294 = scmp.eq.s32.totalorder %s39, 0
      %p295 = por %p293, %p294
      %p296 = scmp.ne.s32.totalorder %s288, %s290
      %p297 = scmp.eq.s32.totalorder %s44, 1
      %p298 = por %p296, %p297
      %p299 = scmp.ne.s32.totalorder %s290, %s291
      %p300 = scmp.eq.s32.totalorder %s44, 0
      %p301 = por %p299, %p300
      %p302 = scmp.ne.s32.totalorder %s290, %s291
      %p303 = scmp.eq.s32.totalorder %s45, 1
      %p304 = por %p302, %p303
      %p306 = scmp.ne.s32.totalorder %s291, %s305
      %p307 = scmp.eq.s32.totalorder %s45, 0
      %p308 = por %p306, %p307
      %s310 = sadd.s32 %s309, 1
      %p313 = scmp.eq.s32.totalorder %s39, 1
      %p314 = scmp.ne.s32.totalorder %s309, %s311
      %p315 = scmp.eq.s32.totalorder %s39, 0
      %p316 = por %p314, %p315
      %p317 = scmp.ne.s32.totalorder %s309, %s311
      %p318 = scmp.eq.s32.totalorder %s44, 1
      %p319 = por %p317, %p318
      %p320 = scmp.ne.s32.totalorder %s311, %s312
      %p321 = scmp.eq.s32.totalorder %s44, 0
      %p322 = por %p320, %p321
      %p323 = scmp.ne.s32.totalorder %s311, %s312
      %p324 = scmp.eq.s32.totalorder %s45, 1
      %p325 = por %p323, %p324
      %p327 = scmp.ne.s32.totalorder %s312, %s326
      %p328 = scmp.eq.s32.totalorder %s45, 0
      %p329 = por %p327, %p328
      %s331 = sadd.s32 %s330, 1
      %p334 = scmp.eq.s32.totalorder %s39, 1
      %p335 = scmp.ne.s32.totalorder %s330, %s332
      %p336 = scmp.eq.s32.totalorder %s39, 0
      %p337 = por %p335, %p336
      %p338 = scmp.ne.s32.totalorder %s330, %s332
      %p339 = scmp.eq.s32.totalorder %s44, 1
      %p340 = por %p338, %p339
      %p341 = scmp.ne.s32.totalorder %s332, %s333
      %p342 = scmp.eq.s32.totalorder %s44, 0
      %p343 = por %p341, %p342
      %p344 = scmp.ne.s32.totalorder %s332, %s333
      %p345 = scmp.eq.s32.totalorder %s45, 1
      %p346 = por %p344, %p345
      %p348 = scmp.ne.s32.totalorder %s333, %s347
      %p349 = scmp.eq.s32.totalorder %s45, 0
      %p350 = por %p348, %p349
      %s351 = ssub.s32 %s39, %s46
      %p352 = scmp.eq.s32.totalorder %s351, 0
      %s354 = sadd.s32 %s353, 1
      %s355 = scalar_select %p352, %s353, %s354
      %p358 = pneg %p352
      %p359 = scmp.eq.s32.totalorder %s39, 1
      %p360 = por %p358, %p359
      %p361 = scmp.ne.s32.totalorder %s353, %s356
      %p362 = scmp.eq.s32.totalorder %s39, 0
      %p363 = por %p361, %p362
      %p364 = scmp.ne.s32.totalorder %s353, %s356
      %p365 = scmp.eq.s32.totalorder %s44, 1
      %p366 = por %p364, %p365
      %p367 = scmp.ne.s32.totalorder %s356, %s357
      %p368 = scmp.eq.s32.totalorder %s44, 0
      %p369 = por %p367, %p368
      %p370 = scmp.ne.s32.totalorder %s356, %s357
      %p371 = scmp.eq.s32.totalorder %s45, 1
      %p372 = por %p370, %p371
      %p374 = scmp.ne.s32.totalorder %s357, %s373
      %p375 = scmp.eq.s32.totalorder %s45, 0
      %p376 = por %p374, %p375
      %s377 = ssub.s32 %s39, %s46
      %p378 = scmp.eq.s32.totalorder %s377, 0
      %s380 = sadd.s32 %s379, 1
      %s381 = scalar_select %p378, %s379, %s380
      %p384 = pneg %p378
      %p385 = scmp.eq.s32.totalorder %s39, 1
      %p386 = por %p384, %p385
      %p387 = scmp.ne.s32.totalorder %s379, %s382
      %p388 = scmp.eq.s32.totalorder %s39, 0
      %p389 = por %p387, %p388
      %p390 = scmp.ne.s32.totalorder %s379, %s382
      %p391 = scmp.eq.s32.totalorder %s44, 1
      %p392 = por %p390, %p391
      %p393 = scmp.ne.s32.totalorder %s382, %s383
      %p394 = scmp.eq.s32.totalorder %s44, 0
      %p395 = por %p393, %p394
      %p396 = scmp.ne.s32.totalorder %s382, %s383
      %p397 = scmp.eq.s32.totalorder %s45, 1
      %p398 = por %p396, %p397
      %p400 = scmp.ne.s32.totalorder %s383, %s399
      %p401 = scmp.eq.s32.totalorder %s45, 0
      %p402 = por %p400, %p401
      %s403 = ssub.s32 %s39, %s46
      %p404 = scmp.eq.s32.totalorder %s403, 0
      %s406 = sadd.s32 %s405, 1
      %s407 = scalar_select %p404, %s405, %s406
      %p410 = pneg %p404
      %p411 = scmp.eq.s32.totalorder %s39, 1
      %p412 = por %p410, %p411
      %p413 = scmp.ne.s32.totalorder %s405, %s408
      %p414 = scmp.eq.s32.totalorder %s39, 0
      %p415 = por %p413, %p414
      %p416 = scmp.ne.s32.totalorder %s405, %s408
      %p417 = scmp.eq.s32.totalorder %s44, 1
      %p418 = por %p416, %p417
      %p419 = scmp.ne.s32.totalorder %s408, %s409
      %p420 = scmp.eq.s32.totalorder %s44, 0
      %p421 = por %p419, %p420
      %p422 = scmp.ne.s32.totalorder %s408, %s409
      %p423 = scmp.eq.s32.totalorder %s45, 1
      %p424 = por %p422, %p423
      %p426 = scmp.ne.s32.totalorder %s409, %s425
      %p427 = scmp.eq.s32.totalorder %s45, 0
      %p428 = por %p426, %p427
      %s429 = ssub.s32 %s39, %s46
      %p430 = scmp.eq.s32.totalorder %s429, 0
      %s432 = sadd.s32 %s431, 1
      %s433 = scalar_select %p430, %s431, %s432
      %p436 = pneg %p430
      %p437 = scmp.eq.s32.totalorder %s39, 1
      %p438 = por %p436, %p437
      %p439 = scmp.ne.s32.totalorder %s431, %s434
      %p440 = scmp.eq.s32.totalorder %s39, 0
      %p441 = por %p439, %p440
      %p442 = scmp.ne.s32.totalorder %s431, %s434
      %p443 = scmp.eq.s32.totalorder %s44, 1
      %p444 = por %p442, %p443
      %p445 = scmp.ne.s32.totalorder %s434, %s435
      %p446 = scmp.eq.s32.totalorder %s44, 0
      %p447 = por %p445, %p446
      %p448 = scmp.ne.s32.totalorder %s434, %s435
      %p449 = scmp.eq.s32.totalorder %s45, 1
      %p450 = por %p448, %p449
      %p452 = scmp.ne.s32.totalorder %s435, %s451
      %p453 = scmp.eq.s32.totalorder %s45, 0
      %p454 = por %p452, %p453
      %s455 = ssub.s32 %s39, %s46
      %p456 = scmp.eq.s32.totalorder %s455, 0
      %s458 = sadd.s32 %s457, 1
      %s459 = scalar_select %p456, %s457, %s458
      %p462 = pneg %p456
      %p463 = scmp.eq.s32.totalorder %s39, 1
      %p464 = por %p462, %p463
      %p465 = scmp.ne.s32.totalorder %s457, %s460
      %p466 = scmp.eq.s32.totalorder %s39, 0
      %p467 = por %p465, %p466
      %p468 = scmp.ne.s32.totalorder %s457, %s460
      %p469 = scmp.eq.s32.totalorder %s44, 1
      %p470 = por %p468, %p469
      %p471 = scmp.ne.s32.totalorder %s460, %s461
      %p472 = scmp.eq.s32.totalorder %s44, 0
      %p473 = por %p471, %p472
      %p474 = scmp.ne.s32.totalorder %s460, %s461
      %p475 = scmp.eq.s32.totalorder %s45, 1
      %p476 = por %p474, %p475
      %p478 = scmp.ne.s32.totalorder %s461, %s477
      %p479 = scmp.eq.s32.totalorder %s45, 0
      %p480 = por %p478, %p479
      %s481 = ssub.s32 %s39, %s46
      %p482 = scmp.eq.s32.totalorder %s481, 0
      %s484 = sadd.s32 %s483, 1
      %s485 = scalar_select %p482, %s483, %s484
      %p488 = pneg %p482
      %p489 = scmp.eq.s32.totalorder %s39, 1
      %p490 = por %p488, %p489
      %p491 = scmp.ne.s32.totalorder %s483, %s486
      %p492 = scmp.eq.s32.totalorder %s39, 0
      %p493 = por %p491, %p492
      %p494 = scmp.ne.s32.totalorder %s483, %s486
      %p495 = scmp.eq.s32.totalorder %s44, 1
      %p496 = por %p494, %p495
      %p497 = scmp.ne.s32.totalorder %s486, %s487
      %p498 = scmp.eq.s32.totalorder %s44, 0
      %p499 = por %p497, %p498
      %p500 = scmp.ne.s32.totalorder %s486, %s487
      %p501 = scmp.eq.s32.totalorder %s45, 1
      %p502 = por %p500, %p501
      %p504 = scmp.ne.s32.totalorder %s487, %s503
      %p505 = scmp.eq.s32.totalorder %s45, 0
      %p506 = por %p504, %p505
      %s507 = ssub.s32 %s39, %s46
      %p508 = scmp.eq.s32.totalorder %s507, 0
      %s510 = sadd.s32 %s509, 1
      %s511 = scalar_select %p508, %s509, %s510
      %p514 = pneg %p508
      %p515 = scmp.eq.s32.totalorder %s39, 1
      %p516 = por %p514, %p515
      %p517 = scmp.ne.s32.totalorder %s509, %s512
      %p518 = scmp.eq.s32.totalorder %s39, 0
      %p519 = por %p517, %p518
      %p520 = scmp.ne.s32.totalorder %s509, %s512
      %p521 = scmp.eq.s32.totalorder %s44, 1
      %p522 = por %p520, %p521
      %p523 = scmp.ne.s32.totalorder %s512, %s513
      %p524 = scmp.eq.s32.totalorder %s44, 0
      %p525 = por %p523, %p524
      %p526 = scmp.ne.s32.totalorder %s512, %s513
      %p527 = scmp.eq.s32.totalorder %s45, 1
      %p528 = por %p526, %p527
      %p530 = scmp.ne.s32.totalorder %s513, %s529
      %p531 = scmp.eq.s32.totalorder %s45, 0
      %p532 = por %p530, %p531
      %s533 = ssub.s32 %s39, %s46
      %p534 = scmp.eq.s32.totalorder %s533, 0
      %s536 = sadd.s32 %s535, 1
      %s537 = scalar_select %p534, %s535, %s536
      %p540 = pneg %p534
      %p541 = scmp.eq.s32.totalorder %s39, 1
      %p542 = por %p540, %p541
      %p543 = scmp.ne.s32.totalorder %s535, %s538
      %p544 = scmp.eq.s32.totalorder %s39, 0
      %p545 = por %p543, %p544
      %p546 = scmp.ne.s32.totalorder %s535, %s538
      %p547 = scmp.eq.s32.totalorder %s44, 1
      %p548 = por %p546, %p547
      %p549 = scmp.ne.s32.totalorder %s538, %s539
      %p550 = scmp.eq.s32.totalorder %s44, 0
      %p551 = por %p549, %p550
      %p552 = scmp.ne.s32.totalorder %s538, %s539
      %p553 = scmp.eq.s32.totalorder %s45, 1
      %p554 = por %p552, %p553
      %p556 = scmp.ne.s32.totalorder %s539, %s555
      %p557 = scmp.eq.s32.totalorder %s45, 0
      %p558 = por %p556, %p557
      %p559 = scmp.le.s32.totalorder 1, %s39
      %p560 = scmp.lt.s32.totalorder %s39, 3
      %p561 = pnand %p559, %p560
      %p562 = pneg %p561
      // Predicated region
      $region9: #{gnn_nets_forward.1} parent=5 // pred_check
        _
      $region10: #{gnn_nets_forward.1} parent=5 // pred_check_branch
        %564 = sbr.rel (%p561) target = $region12
      $region11: #{gnn_nets_forward.1} parent=5 // pred_region
        %s565 = ssub.s32 %s39, 1
        // Predicated region
        $region13: #{gnn_nets_forward.1} parent=11 // pred_check
          %p566 = pneg %p112
        $region14: #{gnn_nets_forward.1} parent=11 // pred_check_branch
          %568 = sbr.rel (%p566) target = $region16
        $region15: #{gnn_nets_forward.1} parent=11 // pred_region
          _
        $region16: #{gnn_nets_forward.1} parent=11 // pred_fallthru
          _
        // Predicated region
        $region17: #{gnn_nets_forward.1} parent=11 // pred_check
          %p569 = pneg %p133
        $region18: #{gnn_nets_forward.1} parent=11 // pred_check_branch
          %571 = sbr.rel (%p569) target = $region20
        $region19: #{gnn_nets_forward.1} parent=11 // pred_region
          _
        $region20: #{gnn_nets_forward.1} parent=11 // pred_fallthru
          _
        // Predicated region
        $region21: #{gnn_nets_forward.1} parent=11 // pred_check
          %p572 = pneg %p154
        $region22: #{gnn_nets_forward.1} parent=11 // pred_check_branch
          %574 = sbr.rel (%p572) target = $region24
        $region23: #{gnn_nets_forward.1} parent=11 // pred_region
          _
        $region24: #{gnn_nets_forward.1} parent=11 // pred_fallthru
          _
        // Predicated region
        $region25: #{gnn_nets_forward.1} parent=11 // pred_check
          %p575 = pneg %p175
        $region26: #{gnn_nets_forward.1} parent=11 // pred_check_branch
          %577 = sbr.rel (%p575) target = $region28
        $region27: #{gnn_nets_forward.1} parent=11 // pred_region
          _
        $region28: #{gnn_nets_forward.1} parent=11 // pred_fallthru
          _
        // Predicated region
        $region29: #{gnn_nets_forward.1} parent=11 // pred_check
          %p578 = pneg %p196
        $region30: #{gnn_nets_forward.1} parent=11 // pred_check_branch
          %580 = sbr.rel (%p578) target = $region32
        $region31: #{gnn_nets_forward.1} parent=11 // pred_region
          _
        $region32: #{gnn_nets_forward.1} parent=11 // pred_fallthru
          _
        // Predicated region
        $region33: #{gnn_nets_forward.1} parent=11 // pred_check
          %p581 = pneg %p217
        $region34: #{gnn_nets_forward.1} parent=11 // pred_check_branch
          %583 = sbr.rel (%p581) target = $region36
        $region35: #{gnn_nets_forward.1} parent=11 // pred_region
          _
        $region36: #{gnn_nets_forward.1} parent=11 // pred_fallthru
          _
        // Predicated region
        $region37: #{gnn_nets_forward.1} parent=11 // pred_check
          %p584 = pneg %p238
        $region38: #{gnn_nets_forward.1} parent=11 // pred_check_branch
          %586 = sbr.rel (%p584) target = $region40
        $region39: #{gnn_nets_forward.1} parent=11 // pred_region
          %588 = vsyncadd [#allocation3], 0
          %s589 = sshll.u32 %s8, 4
          %s590 = int_to_ptr.hbm [resolvable:$true] %s589
          %s591 = sshll.u32 [#allocation2], 4
          %s592 = int_to_ptr.vmem [resolvable:$true] %s591
          %597 = dma.hbm_to_vmem [thread:$0]  %s590, 1024, %s592, [#allocation3], 64, 64, 4
        $region40: #{gnn_nets_forward.1} parent=11 // pred_fallthru
          _
        // Predicated region
        $region41: #{gnn_nets_forward.1} parent=11 // pred_check
          %p598 = pneg %p259
        $region42: #{gnn_nets_forward.1} parent=11 // pred_check_branch
          %600 = sbr.rel (%p598) target = $region44
        $region43: #{gnn_nets_forward.1} parent=11 // pred_region
          %602 = vsyncadd [#allocation6], 0
          %s604 = sshll.u32 %s9, 4
          %s605 = int_to_ptr.hbm [resolvable:$true] %s604
          %s606 = sshll.u32 [#allocation5], 4
          %s607 = int_to_ptr.vmem [resolvable:$true] %s606
          %609 = dma.hbm_to_vmem [thread:$0]  %s605, 16, %s607, [#allocation6]
        $region44: #{gnn_nets_forward.1} parent=11 // pred_fallthru
          _
        // Predicated region
        $region45: #{gnn_nets_forward.1} parent=11 // pred_check
          %p610 = pneg %p280
        $region46: #{gnn_nets_forward.1} parent=11 // pred_check_branch
          %612 = sbr.rel (%p610) target = $region48
        $region47: #{gnn_nets_forward.1} parent=11 // pred_region
          _
        $region48: #{gnn_nets_forward.1} parent=11 // pred_fallthru
          _
        // Predicated region
        $region49: #{gnn_nets_forward.1} parent=11 // pred_check
          %p613 = pneg %p301
        $region50: #{gnn_nets_forward.1} parent=11 // pred_check_branch
          %615 = sbr.rel (%p613) target = $region52
        $region51: #{gnn_nets_forward.1} parent=11 // pred_region
          %617 = vsyncadd [#allocation6], 0
          %s619 = sshll.u32 %s11, 4
          %s620 = int_to_ptr.hbm [resolvable:$true] %s619
          %s621 = sshll.u32 [#allocation7], 4
          %s622 = int_to_ptr.vmem [resolvable:$true] %s621
          %624 = dma.hbm_to_vmem [thread:$0]  %s620, 16, %s622, [#allocation6]
        $region52: #{gnn_nets_forward.1} parent=11 // pred_fallthru
          _
        // Predicated region
        $region53: #{gnn_nets_forward.1} parent=11 // pred_check
          %p625 = pneg %p322
        $region54: #{gnn_nets_forward.1} parent=11 // pred_check_branch
          %627 = sbr.rel (%p625) target = $region56
        $region55: #{gnn_nets_forward.1} parent=11 // pred_region
          _
        $region56: #{gnn_nets_forward.1} parent=11 // pred_fallthru
          _
        // Predicated region
        $region57: #{gnn_nets_forward.1} parent=11 // pred_check
          %p628 = pneg %p343
        $region58: #{gnn_nets_forward.1} parent=11 // pred_check_branch
          %630 = sbr.rel (%p628) target = $region60
        $region59: #{gnn_nets_forward.1} parent=11 // pred_region
          _
        $region60: #{gnn_nets_forward.1} parent=11 // pred_fallthru
          _
      $region12: #{gnn_nets_forward.1} parent=5 // pred_fallthru
        _
      %p631 = scmp.lt.s32.totalorder %s39, 2
      // Predicated region
      $region61: #{gnn_nets_forward.1} parent=5 // pred_check
        %p632 = pneg %p631
      $region62: #{gnn_nets_forward.1} parent=5 // pred_check_branch
        %634 = sbr.rel (%p632) target = $region64
      $region63: #{gnn_nets_forward.1} parent=5 // pred_region
        // Predicated region
        $region65: #{gnn_nets_forward.1} parent=63 // pred_check
          %p635 = pneg %p59
        $region66: #{gnn_nets_forward.1} parent=63 // pred_check_branch
          %637 = sbr.rel (%p635) target = $region68
        $region67: #{gnn_nets_forward.1} parent=63 // pred_region
          %p638 = scmp.lt.s32.totalorder %s39, 1
          %s639 = scalar_select %p638, %s39, 1
          %s640 = smul.addr %s639, 2
          %s641 = smul.addr %s640, 4
          %s642 = scalar_lea.vmem %s0, %s641
        $region68: #{gnn_nets_forward.1} parent=63 // pred_fallthru
          _
        // Predicated region
        $region69: #{gnn_nets_forward.1} parent=63 // pred_check
          %p643 = pneg %p85
        $region70: #{gnn_nets_forward.1} parent=63 // pred_check_branch
          %645 = sbr.rel (%p643) target = $region72
        $region71: #{gnn_nets_forward.1} parent=63 // pred_region
          %p646 = scmp.lt.s32.totalorder %s39, 1
          %s647 = scalar_select %p646, %s39, 1
          %s648 = smul.addr %s647, 2
          %s649 = smul.addr %s648, 4
          %s650 = scalar_lea.vmem %s1, %s649
        $region72: #{gnn_nets_forward.1} parent=63 // pred_fallthru
          _
      $region64: #{gnn_nets_forward.1} parent=5 // pred_fallthru
        _
      %p651 = scmp.le.s32.totalorder 1, %s39
      %p652 = scmp.lt.s32.totalorder %s39, 3
      %p653 = pnand %p651, %p652
      %p654 = pneg %p653
      // Predicated region
      $region73: #{gnn_nets_forward.1} parent=5 // pred_check
        _
      $region74: #{gnn_nets_forward.1} parent=5 // pred_check_branch
        %656 = sbr.rel (%p653) target = $region76
      $region75: #{gnn_nets_forward.1} parent=5 // pred_region
        %s657 = ssub.s32 %s39, 1
        // Predicated region
        $region77: #{gnn_nets_forward.1} parent=75 // pred_check
          %p658 = pneg %p238
        $region78: #{gnn_nets_forward.1} parent=75 // pred_check_branch
          %660 = sbr.rel (%p658) target = $region80
        $region79: #{gnn_nets_forward.1} parent=75 // pred_region
          %662 = dma.done [#allocation3], 1024
        $region80: #{gnn_nets_forward.1} parent=75 // pred_fallthru
          _
        // Predicated region
        $region81: #{gnn_nets_forward.1} parent=75 // pred_check
          %p663 = pneg %p259
        $region82: #{gnn_nets_forward.1} parent=75 // pred_check_branch
          %665 = sbr.rel (%p663) target = $region84
        $region83: #{gnn_nets_forward.1} parent=75 // pred_region
          %667 = dma.done [#allocation6], 16
        $region84: #{gnn_nets_forward.1} parent=75 // pred_fallthru
          _
        // Predicated region
        $region85: #{gnn_nets_forward.1} parent=75 // pred_check
          %p668 = pneg %p301
        $region86: #{gnn_nets_forward.1} parent=75 // pred_check_branch
          %670 = sbr.rel (%p668) target = $region88
        $region87: #{gnn_nets_forward.1} parent=75 // pred_region
          %672 = dma.done [#allocation6], 16
        $region88: #{gnn_nets_forward.1} parent=75 // pred_fallthru
          _
        %p673 = scmp.lt.s32.totalorder %s44, 1
        %s674 = scalar_select %p673, %s44, 1
        %s675 = smul.addr %s674, 2
        %s676 = smul.addr %s675, 4
        %s677 = scalar_lea.vmem %s0, %s676
        %p678 = pneg %p65
        %p679 = pneg %p62
        %p680 = scmp.lt.s32.totalorder %s44, 1
        %s681 = scalar_select %p680, %s44, 1
        %s682 = smul.addr %s681, 2
        %s683 = smul.addr %s682, 4
        %s684 = scalar_lea.vmem %s1, %s683
        %p685 = pneg %p91
        %p686 = pneg %p88
        %p687 = pneg %p112
        %p688 = pneg %p109
        %p689 = pneg %p133
        %p690 = pneg %p130
        %p691 = pneg %p154
        %p692 = pneg %p151
        %p693 = pneg %p175
        %p694 = pneg %p172
        %p695 = pneg %p196
        %p696 = pneg %p193
        %p697 = pneg %p217
        %p698 = pneg %p214
        %p699 = pneg %p238
        %p700 = pneg %p235
        %p701 = pneg %p259
        %p702 = pneg %p256
        %p703 = pneg %p280
        %p704 = pneg %p277
        %p705 = pneg %p301
        %p706 = pneg %p298
        %p707 = pneg %p322
        %p708 = pneg %p319
        %p709 = pneg %p343
        %p710 = pneg %p340
        %p711 = pneg %p369
        %p712 = pneg %p366
        %p713 = scmp.lt.s32.totalorder %s44, 1
        %s714 = scalar_select %p713, %s44, 1
        %s715 = smul.addr %s714, 2
        %s716 = smul.addr %s715, 8
        %s717 = scalar_lea.vmem %s14, %s716
        %p718 = pneg %p395
        %p719 = pneg %p392
        %p720 = scmp.lt.s32.totalorder %s44, 1
        %s721 = scalar_select %p720, %s44, 1
        %s722 = scalar_lea.vmem %s15, %s721
        %p723 = pneg %p421
        %p724 = pneg %p418
        %p725 = scmp.lt.s32.totalorder %s44, 1
        %s726 = scalar_select %p725, %s44, 1
        %s727 = smul.addr %s726, 2
        %s728 = scalar_lea.vmem %s16, %s727
        %p729 = pneg %p447
        %p730 = pneg %p444
        %s731 = sand.u32 %s434, 1
        %s732 = scalar_lea.sflag [#allocation4], %s731
        %s733 = sand.u32 %s434, 1
        %s734 = scalar_lea.vmem [#allocation8], %s733
        %p735 = pneg %p473
        %p736 = pneg %p470
        %s737 = sand.u32 %s44, 1
        %s738 = scalar_lea.sflag [#allocation10], %s737
        %s739 = sand.u32 %s460, 1
        %s740 = scalar_lea.vmem [#allocation9], %s739
        %p741 = pneg %p499
        %p742 = pneg %p496
        %s743 = sand.u32 %s44, 1
        %s744 = scalar_lea.sflag [#allocation10], %s743
        %s745 = sand.u32 %s486, 1
        %s746 = scalar_lea.vmem [#allocation11], %s745
        %p747 = pneg %p525
        %p748 = pneg %p522
        %s749 = sand.u32 %s44, 1
        %s750 = scalar_lea.sflag [#allocation13], %s749
        %s751 = sand.u32 %s512, 1
        %s752 = scalar_lea.vmem [#allocation12], %s751
        %p753 = pneg %p551
        %p754 = pneg %p548
        %s755 = sand.u32 %s44, 1
        %s756 = scalar_lea.sflag [#allocation13], %s755
        %s757 = sand.u32 %s538, 1
        %s758 = scalar_lea.vmem [#allocation14], %s757
        %p759 = scmp.lt.s32.totalorder %s44, 1
        %s760 = scalar_select %p759, %s44, 1
        %s761 = smul.addr %s760, 2
        %s762 = smul.addr %s761, 4
        %s763 = scalar_lea.vmem %s0, %s762
        %p764 = scmp.lt.s32.totalorder %s44, 1
        %s765 = scalar_select %p764, %s44, 1
        %s766 = smul.addr %s765, 2
        %s767 = smul.addr %s766, 4
        %s768 = scalar_lea.vmem %s1, %s767
        %p769 = scmp.lt.s32.totalorder %s44, 1
        %s770 = scalar_select %p769, %s44, 1
        %s771 = smul.addr %s770, 2
        %s772 = smul.addr %s771, 8
        %s773 = scalar_lea.vmem %s14, %s772
        %p774 = scmp.lt.s32.totalorder %s44, 1
        %s775 = scalar_select %p774, %s44, 1
        %s776 = scalar_lea.vmem %s15, %s775
        %p777 = scmp.lt.s32.totalorder %s44, 1
        %s778 = scalar_select %p777, %s44, 1
        %s779 = smul.addr %s778, 2
        %s780 = scalar_lea.vmem %s16, %s779
        %v782 = vld [vmem:[%s763] sm:$0xf]
        %v783 = vld [vmem:[%s763 + $0x4] sm:$0xf]
        %v784 = vld [vmem:[%s768] sm:$0xf]
        %v785 = vld [vmem:[%s768 + $0x4] sm:$0xf]
        %v786 = vld [vmem:[%s2] sm:$0xf]
        %v787 = vld [vmem:[%s2 + $0x4] sm:$0xf]
        %v790 = vunpack.c.l.b16 %v784
        %v791 = vunpack.c.l.b16 %v785
        %v792 = vpack.c.b16 %v791, %v790
        %v795 = vunpack.c.l.b16 %v786
        %v796 = vunpack.c.l.b16 %v787
        %v797 = vpack.c.b16 %v796, %v795
        %vm799 = vcmask 130048
        %v801 = vsel %vm799, %v792, 0
        %803 = vmatpush.bf16.msra.mxu0 0
        %804 = vmatpush.bf16.msra.mxu0 0
        %805 = vmatpush.bf16.msra.mxu0 0
        %806 = vmatpush.bf16.msra.mxu0 0
        %807 = vmatpush.bf16.msra.mxu0 0
        %808 = vmatpush.bf16.msra.mxu0 0
        %809 = vmatpush.bf16.msra.mxu0 0
        %810 = vmatpush.bf16.msra.mxu0 %v797
        %811 = vmatmul.bf16.gmra.mxu0 %v801
        %v812 = vpop.f32.mrf.mxu0
        %v813 = vadd.f32 0.0, %v812
        %v814 = vpop.f32.mrf.mxu0
        %v815 = vadd.f32 0.0, %v814
        %816 = vdwg.mxu0
        %v817 = vpack.c.bf16 %v815, %v813
        %v818 = vld [vmem:[%s3] sm:$0x1]
        %v820 = vperm.slane %v818, 0
        %v824 = vunpack.c.l.b16 %v782
        %v825 = vunpack.c.l.b16 %v783
        %v826 = vpack.c.b16 %v825, %v824
        %v828 = vsel %vm799, %v826, 0
        %830 = vmatpush.bf16.msra.mxu0 0
        %831 = vmatpush.bf16.msra.mxu0 0
        %832 = vmatpush.bf16.msra.mxu0 0
        %833 = vmatpush.bf16.msra.mxu0 0
        %834 = vmatpush.bf16.msra.mxu0 0
        %835 = vmatpush.bf16.msra.mxu0 0
        %836 = vmatpush.bf16.msra.mxu0 0
        %837 = vmatpush.bf16.msra.mxu0 %v817
        %838 = vmatmul.bf16.gmra.mxu0 %v828
        %v839 = vpop.f32.mrf.mxu0
        %v840 = vadd.f32 %v820, %v839
        %v841 = vpop.f32.mrf.mxu0
        %v842 = vadd.f32 %v820, %v841
        %843 = vdwg.mxu0
        %v844 = vmax.f32 %v840, 0.0
        %v845 = vmax.f32 %v842, 0.0
        %v846 = vpack.c.bf16 %v845, %v844
        %v847 = vld [vmem:[%s4] sm:$0xf]
        %v848 = vld [vmem:[%s4 + $0x4] sm:$0xf]
        %v849 = vld [vmem:[%s4 + $0x8] sm:$0xf]
        %v850 = vld [vmem:[%s4 + $0xc] sm:$0xf]
        %v851 = vld [vmem:[%s4 + $0x10] sm:$0xf]
        %v852 = vld [vmem:[%s4 + $0x14] sm:$0xf]
        %v853 = vld [vmem:[%s4 + $0x18] sm:$0xf]
        %v854 = vld [vmem:[%s4 + $0x1c] sm:$0xf]
        %v855 = vld [vmem:[%s4 + $0x20] sm:$0xf]
        %v856 = vld [vmem:[%s4 + $0x24] sm:$0xf]
        %v857 = vld [vmem:[%s4 + $0x28] sm:$0xf]
        %v858 = vld [vmem:[%s4 + $0x2c] sm:$0xf]
        %v859 = vld [vmem:[%s4 + $0x30] sm:$0xf]
        %v860 = vld [vmem:[%s4 + $0x34] sm:$0xf]
        %v861 = vld [vmem:[%s4 + $0x38] sm:$0xf]
        %v862 = vld [vmem:[%s4 + $0x3c] sm:$0xf]
        %v879 = vunpack.c.l.b16 %v847
        %v880 = vunpack.c.l.b16 %v848
        %v881 = vunpack.c.l.b16 %v849
        %v882 = vunpack.c.l.b16 %v850
        %v883 = vunpack.c.l.b16 %v851
        %v884 = vunpack.c.l.b16 %v852
        %v885 = vunpack.c.l.b16 %v853
        %v886 = vunpack.c.l.b16 %v854
        %v887 = vunpack.c.l.b16 %v855
        %v888 = vunpack.c.l.b16 %v856
        %v889 = vunpack.c.l.b16 %v857
        %v890 = vunpack.c.l.b16 %v858
        %v891 = vunpack.c.l.b16 %v859
        %v892 = vunpack.c.l.b16 %v860
        %v893 = vunpack.c.l.b16 %v861
        %v894 = vunpack.c.l.b16 %v862
        %v895 = vpack.c.b16 %v880, %v879
        %v896 = vpack.c.b16 %v882, %v881
        %v897 = vpack.c.b16 %v884, %v883
        %v898 = vpack.c.b16 %v886, %v885
        %v899 = vpack.c.b16 %v888, %v887
        %v900 = vpack.c.b16 %v890, %v889
        %v901 = vpack.c.b16 %v892, %v891
        %v902 = vpack.c.b16 %v894, %v893
        %911 = vmatpush.bf16.msra.mxu0 %v902
        %912 = vmatpush.bf16.msra.mxu0 %v901
        %913 = vmatpush.bf16.msra.mxu0 %v900
        %914 = vmatpush.bf16.msra.mxu0 %v899
        %915 = vmatpush.bf16.msra.mxu0 %v898
        %916 = vmatpush.bf16.msra.mxu0 %v897
        %917 = vmatpush.bf16.msra.mxu0 %v896
        %918 = vmatpush.bf16.msra.mxu0 %v895
        %919 = vmatmul.bf16.gmra.mxu0 %v846
        %v920 = vpop.f32.mrf.mxu0
        %v921 = vadd.f32 0.0, %v920
        %v922 = vpop.f32.mrf.mxu0
        %v923 = vadd.f32 0.0, %v922
        %924 = vdwg.mxu0
        %v925 = vpack.c.bf16 %v923, %v921
        %v926 = vld [vmem:[%s5] sm:$0x1]
        %v928 = vperm.slane %v926, 0
        %930 = vmatpush.bf16.msra.mxu0 0
        %931 = vmatpush.bf16.msra.mxu0 0
        %932 = vmatpush.bf16.msra.mxu0 0
        %933 = vmatpush.bf16.msra.mxu0 0
        %934 = vmatpush.bf16.msra.mxu0 0
        %935 = vmatpush.bf16.msra.mxu0 0
        %936 = vmatpush.bf16.msra.mxu0 0
        %937 = vmatpush.bf16.msra.mxu0 %v925
        %938 = vmatmul.bf16.gmra.mxu0 %v828
        %v939 = vpop.f32.mrf.mxu0
        %v940 = vadd.f32 %v928, %v939
        %v941 = vpop.f32.mrf.mxu0
        %v942 = vadd.f32 %v928, %v941
        %943 = vdwg.mxu0
        %v944 = vmax.f32 %v940, 0.0
        %v945 = vmax.f32 %v942, 0.0
        %v946 = vpack.c.bf16 %v945, %v944
        %v947 = vld [vmem:[%s6] sm:$0xf]
        %v948 = vld [vmem:[%s6 + $0x4] sm:$0xf]
        %v949 = vld [vmem:[%s6 + $0x8] sm:$0xf]
        %v950 = vld [vmem:[%s6 + $0xc] sm:$0xf]
        %v951 = vld [vmem:[%s6 + $0x10] sm:$0xf]
        %v952 = vld [vmem:[%s6 + $0x14] sm:$0xf]
        %v953 = vld [vmem:[%s6 + $0x18] sm:$0xf]
        %v954 = vld [vmem:[%s6 + $0x1c] sm:$0xf]
        %v955 = vld [vmem:[%s6 + $0x20] sm:$0xf]
        %v956 = vld [vmem:[%s6 + $0x24] sm:$0xf]
        %v957 = vld [vmem:[%s6 + $0x28] sm:$0xf]
        %v958 = vld [vmem:[%s6 + $0x2c] sm:$0xf]
        %v959 = vld [vmem:[%s6 + $0x30] sm:$0xf]
        %v960 = vld [vmem:[%s6 + $0x34] sm:$0xf]
        %v961 = vld [vmem:[%s6 + $0x38] sm:$0xf]
        %v962 = vld [vmem:[%s6 + $0x3c] sm:$0xf]
        %v979 = vunpack.c.l.b16 %v947
        %v980 = vunpack.c.l.b16 %v948
        %v981 = vunpack.c.l.b16 %v949
        %v982 = vunpack.c.l.b16 %v950
        %v983 = vunpack.c.l.b16 %v951
        %v984 = vunpack.c.l.b16 %v952
        %v985 = vunpack.c.l.b16 %v953
        %v986 = vunpack.c.l.b16 %v954
        %v987 = vunpack.c.l.b16 %v955
        %v988 = vunpack.c.l.b16 %v956
        %v989 = vunpack.c.l.b16 %v957
        %v990 = vunpack.c.l.b16 %v958
        %v991 = vunpack.c.l.b16 %v959
        %v992 = vunpack.c.l.b16 %v960
        %v993 = vunpack.c.l.b16 %v961
        %v994 = vunpack.c.l.b16 %v962
        %v995 = vpack.c.b16 %v980, %v979
        %v996 = vpack.c.b16 %v982, %v981
        %v997 = vpack.c.b16 %v984, %v983
        %v998 = vpack.c.b16 %v986, %v985
        %v999 = vpack.c.b16 %v988, %v987
        %v1000 = vpack.c.b16 %v990, %v989
        %v1001 = vpack.c.b16 %v992, %v991
        %v1002 = vpack.c.b16 %v994, %v993
        %1011 = vmatpush.bf16.msra.mxu0 %v1002
        %1012 = vmatpush.bf16.msra.mxu0 %v1001
        %1013 = vmatpush.bf16.msra.mxu0 %v1000
        %1014 = vmatpush.bf16.msra.mxu0 %v999
        %1015 = vmatpush.bf16.msra.mxu0 %v998
        %1016 = vmatpush.bf16.msra.mxu0 %v997
        %1017 = vmatpush.bf16.msra.mxu0 %v996
        %1018 = vmatpush.bf16.msra.mxu0 %v995
        %1019 = vmatmul.bf16.gmra.mxu0 %v946
        %v1020 = vpop.f32.mrf.mxu0
        %v1021 = vadd.f32 0.0, %v1020
        %v1022 = vpop.f32.mrf.mxu0
        %v1023 = vadd.f32 0.0, %v1022
        %1024 = vdwg.mxu0
        %v1025 = vpack.c.bf16 %v1023, %v1021
        %v1026 = vld [vmem:[%s7] sm:$0x1]
        %v1028 = vperm.slane %v1026, 0
        %1030 = vmatpush.bf16.msra.mxu0 0
        %1031 = vmatpush.bf16.msra.mxu0 0
        %1032 = vmatpush.bf16.msra.mxu0 0
        %1033 = vmatpush.bf16.msra.mxu0 0
        %1034 = vmatpush.bf16.msra.mxu0 0
        %1035 = vmatpush.bf16.msra.mxu0 0
        %1036 = vmatpush.bf16.msra.mxu0 0
        %1037 = vmatpush.bf16.msra.mxu0 %v1025
        %1038 = vmatmul.bf16.gmra.mxu0 %v828
        %v1039 = vpop.f32.mrf.mxu0
        %v1040 = vadd.f32 %v1028, %v1039
        %v1041 = vpop.f32.mrf.mxu0
        %v1042 = vadd.f32 %v1028, %v1041
        %1043 = vdwg.mxu0
        %v1044 = vmax.f32 %v1040, 0.0
        %v1045 = vmax.f32 %v1042, 0.0
        %v1046 = vpack.c.bf16 %v1045, %v1044
        %v1047 = vld [vmem:[#allocation2] sm:$0xf]
        %v1048 = vld [vmem:[#allocation2 + $0x4] sm:$0xf]
        %v1049 = vld [vmem:[#allocation2 + $0x8] sm:$0xf]
        %v1050 = vld [vmem:[#allocation2 + $0xc] sm:$0xf]
        %v1051 = vld [vmem:[#allocation2 + $0x10] sm:$0xf]
        %v1052 = vld [vmem:[#allocation2 + $0x14] sm:$0xf]
        %v1053 = vld [vmem:[#allocation2 + $0x18] sm:$0xf]
        %v1054 = vld [vmem:[#allocation2 + $0x1c] sm:$0xf]
        %v1055 = vld [vmem:[#allocation2 + $0x20] sm:$0xf]
        %v1056 = vld [vmem:[#allocation2 + $0x24] sm:$0xf]
        %v1057 = vld [vmem:[#allocation2 + $0x28] sm:$0xf]
        %v1058 = vld [vmem:[#allocation2 + $0x2c] sm:$0xf]
        %v1059 = vld [vmem:[#allocation2 + $0x30] sm:$0xf]
        %v1060 = vld [vmem:[#allocation2 + $0x34] sm:$0xf]
        %v1061 = vld [vmem:[#allocation2 + $0x38] sm:$0xf]
        %v1062 = vld [vmem:[#allocation2 + $0x3c] sm:$0xf]
        %v1063 = vld [vmem:[#allocation5] sm:$0x1]
        %v1065 = vperm.slane %v1063, 0
        %v1083 = vunpack.c.l.b16 %v1047
        %v1084 = vunpack.c.l.b16 %v1048
        %v1085 = vunpack.c.l.b16 %v1049
        %v1086 = vunpack.c.l.b16 %v1050
        %v1087 = vunpack.c.l.b16 %v1051
        %v1088 = vunpack.c.l.b16 %v1052
        %v1089 = vunpack.c.l.b16 %v1053
        %v1090 = vunpack.c.l.b16 %v1054
        %v1091 = vunpack.c.l.b16 %v1055
        %v1092 = vunpack.c.l.b16 %v1056
        %v1093 = vunpack.c.l.b16 %v1057
        %v1094 = vunpack.c.l.b16 %v1058
        %v1095 = vunpack.c.l.b16 %v1059
        %v1096 = vunpack.c.l.b16 %v1060
        %v1097 = vunpack.c.l.b16 %v1061
        %v1098 = vunpack.c.l.b16 %v1062
        %v1099 = vpack.c.b16 %v1084, %v1083
        %v1100 = vpack.c.b16 %v1086, %v1085
        %v1101 = vpack.c.b16 %v1088, %v1087
        %v1102 = vpack.c.b16 %v1090, %v1089
        %v1103 = vpack.c.b16 %v1092, %v1091
        %v1104 = vpack.c.b16 %v1094, %v1093
        %v1105 = vpack.c.b16 %v1096, %v1095
        %v1106 = vpack.c.b16 %v1098, %v1097
        %1115 = vmatpush.bf16.msra.mxu0 %v1106
        %1116 = vmatpush.bf16.msra.mxu0 %v1105
        %1117 = vmatpush.bf16.msra.mxu0 %v1104
        %1118 = vmatpush.bf16.msra.mxu0 %v1103
        %1119 = vmatpush.bf16.msra.mxu0 %v1102
        %1120 = vmatpush.bf16.msra.mxu0 %v1101
        %1121 = vmatpush.bf16.msra.mxu0 %v1100
        %1122 = vmatpush.bf16.msra.mxu0 %v1099
        %1123 = vmatmul.bf16.gmra.mxu0 %v1046
        %v1124 = vpop.f32.mrf.mxu0
        %v1125 = vadd.f32 %v1065, %v1124
        %v1126 = vpop.f32.mrf.mxu0
        %v1127 = vadd.f32 %v1065, %v1126
        %1128 = vdwg.mxu0
        %v1129 = vmax.f32 %v1125, 0.0
        %v1130 = vmax.f32 %v1127, 0.0
        %v1131 = vpack.c.bf16 %v1130, %v1129
        %v1132 = vld [vmem:[%s10] sm:$0xf]
        %v1133 = vld [vmem:[%s10 + $0x4] sm:$0xf]
        %v1134 = vld [vmem:[%s10 + $0x8] sm:$0xf]
        %v1135 = vld [vmem:[%s10 + $0xc] sm:$0xf]
        %v1136 = vld [vmem:[%s10 + $0x10] sm:$0xf]
        %v1137 = vld [vmem:[%s10 + $0x14] sm:$0xf]
        %v1138 = vld [vmem:[%s10 + $0x18] sm:$0xf]
        %v1139 = vld [vmem:[%s10 + $0x1c] sm:$0xf]
        %v1140 = vld [vmem:[%s10 + $0x20] sm:$0xf]
        %v1141 = vld [vmem:[%s10 + $0x24] sm:$0xf]
        %v1142 = vld [vmem:[%s10 + $0x28] sm:$0xf]
        %v1143 = vld [vmem:[%s10 + $0x2c] sm:$0xf]
        %v1144 = vld [vmem:[%s10 + $0x30] sm:$0xf]
        %v1145 = vld [vmem:[%s10 + $0x34] sm:$0xf]
        %v1146 = vld [vmem:[%s10 + $0x38] sm:$0xf]
        %v1147 = vld [vmem:[%s10 + $0x3c] sm:$0xf]
        %v1148 = vld [vmem:[#allocation7] sm:$0x1]
        %v1150 = vperm.slane %v1148, 0
        %v1168 = vunpack.c.l.b16 %v1132
        %v1169 = vunpack.c.l.b16 %v1133
        %v1170 = vunpack.c.l.b16 %v1134
        %v1171 = vunpack.c.l.b16 %v1135
        %v1172 = vunpack.c.l.b16 %v1136
        %v1173 = vunpack.c.l.b16 %v1137
        %v1174 = vunpack.c.l.b16 %v1138
        %v1175 = vunpack.c.l.b16 %v1139
        %v1176 = vunpack.c.l.b16 %v1140
        %v1177 = vunpack.c.l.b16 %v1141
        %v1178 = vunpack.c.l.b16 %v1142
        %v1179 = vunpack.c.l.b16 %v1143
        %v1180 = vunpack.c.l.b16 %v1144
        %v1181 = vunpack.c.l.b16 %v1145
        %v1182 = vunpack.c.l.b16 %v1146
        %v1183 = vunpack.c.l.b16 %v1147
        %v1184 = vpack.c.b16 %v1169, %v1168
        %v1185 = vpack.c.b16 %v1171, %v1170
        %v1186 = vpack.c.b16 %v1173, %v1172
        %v1187 = vpack.c.b16 %v1175, %v1174
        %v1188 = vpack.c.b16 %v1177, %v1176
        %v1189 = vpack.c.b16 %v1179, %v1178
        %v1190 = vpack.c.b16 %v1181, %v1180
        %v1191 = vpack.c.b16 %v1183, %v1182
        %1200 = vmatpush.bf16.msra.mxu0 %v1191
        %1201 = vmatpush.bf16.msra.mxu0 %v1190
        %1202 = vmatpush.bf16.msra.mxu0 %v1189
        %1203 = vmatpush.bf16.msra.mxu0 %v1188
        %1204 = vmatpush.bf16.msra.mxu0 %v1187
        %1205 = vmatpush.bf16.msra.mxu0 %v1186
        %1206 = vmatpush.bf16.msra.mxu0 %v1185
        %1207 = vmatpush.bf16.msra.mxu0 %v1184
        %1208 = vmatmul.bf16.gmra.mxu0 %v1131
        %v1209 = vpop.f32.mrf.mxu0
        %v1210 = vadd.f32 %v1150, %v1209
        %v1211 = vpop.f32.mrf.mxu0
        %v1212 = vadd.f32 %v1150, %v1211
        %1213 = vdwg.mxu0
        %vm1214 = vcmask 15360
        %v1215 = vsel %vm1214, %v1210, -inf
        %1216 = vmax.xlane.f32.xlu0 %v1215
        %v1217 = vpop.xlane.xlu0 %1216
        %v1218 = vsel %vm1214, %v1212, -inf
        %1219 = vmax.xlane.f32.xlu0 %v1218
        %v1220 = vpop.xlane.xlu0 %1219
        %v1221 = vsub.f32 %v1210, %v1217
        %v1222 = vsub.f32 %v1212, %v1220
        %v1223 = vmul.f32 %v1221, 1.442695
        %v1224 = vpow.pop %v1223
        %v1225 = vmul.f32 %v1222, 1.442695
        %v1226 = vpow.pop %v1225
        %v1227 = vsel %vm1214, %v1224, 0.0
        %1228 = vadd.xlane.f32.xlu0 %v1227
        %v1229 = vpop.xlane.xlu0 %1228
        %v1230 = vsel %vm1214, %v1226, 0.0
        %1231 = vadd.xlane.f32.xlu0 %v1230
        %v1232 = vpop.xlane.xlu0 %1231
        %v1233 = vrcp.pop %v1229
        %v1234 = vrcp.pop %v1232
        %v1235 = vmul.f32 %v1224, %v1233
        %v1236 = vmul.f32 %v1226, %v1234
        %vm1237 = vcmp.gt.f32.partialorder %v1235, 0.5
        %vm1238 = vcmp.gt.f32.partialorder %v1236, 0.5
        %v1239 = vsel %vm1237, 1, 0
        %v1240 = vsel %vm1238, 1, 0
        %v1241 = vcvt.s32.f32 %v1239
        %v1242 = vcvt.s32.f32 %v1240
        %vm1243 = vcmask 7168
        %1244 = vst.msk [vmem:[%s773] sm:$0xff] %vm1243, %v1241
        %1245 = vst.msk [vmem:[%s773 + $0x8] sm:$0xff] %vm1243, %v1242
        %v1246 = vadd.f32 %v1235, 1e-08
        %v1247 = vadd.f32 %v1236, 1e-08
        %v1248 = vlog2.pop %v1246
        %v1249 = vmul.f32 %v1248, 0.6931472
        %v1250 = vlog2.pop %v1247
        %v1251 = vmul.f32 %v1250, 0.6931472
        %v1252 = vsub.f32 %v1249, -0.6931472
        %v1253 = vsub.f32 %v1251, -0.6931472
        %v1254 = vmul.f32 %v1235, %v1252
        %v1255 = vmul.f32 %v1236, %v1253
        %v1256 = vsel %vm1214, %v1254, 0.0
        %1257 = vadd.xlane.f32.xlu0 %v1256
        %v1258 = vpop.xlane.xlu0 %1257
        %v1259 = vsel %vm1214, %v1255, 0.0
        %1260 = vadd.xlane.f32.xlu0 %v1259
        %v1261 = vpop.xlane.xlu0 %1260
        %v1262 = vadd.f32 %v1258, %v1261
        %v1263 = vrot.slane %v1262, 4
        %v1264 = vadd.f32 %v1262, %v1263
        %v1265 = vrot.slane %v1264, 2
        %v1266 = vadd.f32 %v1264, %v1265
        %v1267 = vrot.slane %v1266, 1
        %v1268 = vadd.f32 %v1266, %v1267
        %vm1269 = vcmask 0
        %1270 = vst.msk [vmem:[%s776] sm:$0x1] %vm1269, %v1268
        %v1271 = vpack.c.bf16 %v1236, %v1235
        %1272 = vmatpush.bf16.msra.mxu0 0
        %1273 = vmatpush.bf16.msra.mxu0 0
        %1274 = vmatpush.bf16.msra.mxu0 0
        %1275 = vmatpush.bf16.msra.mxu0 0
        %1276 = vmatpush.bf16.msra.mxu0 0
        %1277 = vmatpush.bf16.msra.mxu0 0
        %1278 = vmatpush.bf16.msra.mxu0 0
        %1279 = vmatpush.bf16.msra.mxu0 %v1271
        %1280 = vmatmul.bf16.gmra.mxu0 %v828
        %v1281 = vpop.f32.mrf.mxu0
        %v1282 = vadd.f32 0.0, %v1281
        %v1283 = vpop.f32.mrf.mxu0
        %v1284 = vadd.f32 0.0, %v1283
        %1285 = vdwg.mxu0
        %1286 = vxpose.xlu0.b32.start [1/16] %v1235, 128
        %1287 = vxpose.xlu0.b32.cont [2/16] %v1236, 128
        %1288 = vxpose.xlu0.b32.cont [3/16] 0.0, 128
        %1289 = vxpose.xlu0.b32.cont [4/16] 0.0, 128
        %1290 = vxpose.xlu0.b32.cont [5/16] 0.0, 128
        %1291 = vxpose.xlu0.b32.cont [6/16] 0.0, 128
        %1292 = vxpose.xlu0.b32.cont [7/16] 0.0, 128
        %1293 = vxpose.xlu0.b32.cont [8/16] 0.0, 128
        %1294 = vxpose.xlu0.b32.cont [9/16] 0.0, 128
        %1295 = vxpose.xlu0.b32.cont [10/16] 0.0, 128
        %1296 = vxpose.xlu0.b32.cont [11/16] 0.0, 128
        %1297 = vxpose.xlu0.b32.cont [12/16] 0.0, 128
        %1298 = vxpose.xlu0.b32.cont [13/16] 0.0, 128
        %1299 = vxpose.xlu0.b32.cont [14/16] 0.0, 128
        %1300 = vxpose.xlu0.b32.cont [15/16] 0.0, 128
        %1301 = vxpose.xlu0.b32.end [16/16] 0.0, 128
        %v1302 = vpop.trf.xlu0
        %v1303 = vpop.trf.xlu0
        %v1304 = vpop.trf.xlu0
        %v1305 = vpop.trf.xlu0
        %v1306 = vpop.trf.xlu0
        %v1307 = vpop.trf.xlu0
        %v1308 = vpop.trf.xlu0
        %v1309 = vpop.trf.xlu0
        %v1310 = vpop.trf.xlu0
        %v1311 = vpop.trf.xlu0
        %v1312 = vpop.trf.xlu0
        %v1313 = vpop.trf.xlu0
        %v1314 = vpop.trf.xlu0
        %v1315 = vpop.trf.xlu0
        %v1316 = vpop.trf.xlu0
        %v1317 = vpop.trf.xlu0
        %v1319 = vsel %vm799, %v1302, 0
        %1321 = vmatpush.msra.mxu0 0.0
        %1322 = vmatpush.msra.mxu0 0.0
        %1323 = vmatpush.msra.mxu0 0.0
        %1324 = vmatpush.msra.mxu0 0.0
        %1325 = vmatpush.msra.mxu0 0.0
        %1326 = vmatpush.msra.mxu0 0.0
        %1327 = vmatpush.msra.mxu0 0.0
        %1328 = vmatpush.msra.mxu0 0.0
        %1329 = vmatpush.msra.mxu0 0.0
        %1330 = vmatpush.msra.mxu0 0.0
        %1331 = vmatpush.msra.mxu0 0.0
        %1332 = vmatpush.msra.mxu0 0.0
        %1333 = vmatpush.msra.mxu0 0.0
        %1334 = vmatpush.msra.mxu0 0.0
        %1335 = vmatpush.msra.mxu0 %v1284
        %1336 = vmatpush.msra.mxu0 %v1282
        %1337 = vmatmul.f32.gmra.mxu0 %v1319
        %v1338 = vpop.f32.mrf.mxu0
        %v1339 = vadd.f32 0.0, %v1338
        %1340 = vdwg.mxu0
        %vm1341 = vcmask 9216
        %1342 = vst.msk [vmem:[%s780] sm:$0x3] %vm1341, %v1339
        %1344 = vset.pattern.permute.xlu0 0
        %1345 = vperm.xlu0 %1344, %v1235
        %v1346 = vpop.permute.xlu0 %1345
        %1349 = vset.pattern.permute.xlu0 0
        %1350 = vperm.xlu0 %1349, %v1236
        %v1351 = vpop.permute.xlu0 %1350
        %v1353 = vmul.f32 %v1044, %v1346
        %v1354 = vmul.f32 %v1045, %v1351
        %v1355 = vadd.f32 %v1353, %v1354
        %v1356 = vrot.slane %v1355, 4
        %v1357 = vadd.f32 %v1355, %v1356
        %v1358 = vrot.slane %v1357, 2
        %v1359 = vadd.f32 %v1357, %v1358
        %v1360 = vrot.slane %v1359, 1
        %v1361 = vadd.f32 %v1359, %v1360
        %v1362 = vrcp.pop 16.0
        %v1363 = vmul.f32 16.0, %v1362
        %v1364 = vsub.f32 1.0, %v1363
        %v1365 = vmul.f32 %v1362, %v1364
        %v1366 = vadd.f32 %v1362, %v1365
        %vm1367 = vweird.f32 %v1362
        %v1368 = vsel %vm1367, %v1362, %v1366
        %v1369 = vmul.f32 %v1361, %v1368
        %1370 = vst [vmem:[%s734] sm:$0x1] %v1369
        %v1371 = vld [vmem:[%s12] sm:$0x3f]
        %v1372 = vmul.f32 %v1369, %v1369
        %1373 = vadd.xlane.f32.xlu0 %v1372
        %v1374 = vpop.xlane.xlu0 %1373
        %v1375 = vmul.f32 %v1371, %v1371
        %1376 = vmatpush.xpose.msra.mxu0 0.0
        %1377 = vmatpush.xpose.msra.mxu0 0.0
        %1378 = vmatpush.xpose.msra.mxu0 0.0
        %1379 = vmatpush.xpose.msra.mxu0 0.0
        %1380 = vmatpush.xpose.msra.mxu0 0.0
        %1381 = vmatpush.xpose.msra.mxu0 0.0
        %1382 = vmatpush.xpose.msra.mxu0 0.0
        %1383 = vmatpush.xpose.msra.mxu0 0.0
        %1384 = vmatpush.xpose.msra.mxu0 0.0
        %1385 = vmatpush.xpose.msra.mxu0 0.0
        %1386 = vmatpush.xpose.msra.mxu0 0.0
        %1387 = vmatpush.xpose.msra.mxu0 0.0
        %1388 = vmatpush.xpose.msra.mxu0 0.0
        %1389 = vmatpush.xpose.msra.mxu0 0.0
        %1390 = vmatpush.xpose.msra.mxu0 0.0
        %1391 = vmatpush.xpose.msra.mxu0 %v1375
        %1392 = vmatmul.f32.gmra.mxu0 1.0
        %v1393 = vpop.f32.mrf.mxu0
        %v1394 = vadd.f32 0.0, %v1393
        %1395 = vdwg.mxu0
        %1396 = vmatpush.xpose.msra.mxu0 0.0
        %1397 = vmatpush.xpose.msra.mxu0 0.0
        %1398 = vmatpush.xpose.msra.mxu0 0.0
        %1399 = vmatpush.xpose.msra.mxu0 0.0
        %1400 = vmatpush.xpose.msra.mxu0 0.0
        %1401 = vmatpush.xpose.msra.mxu0 0.0
        %1402 = vmatpush.xpose.msra.mxu0 0.0
        %1403 = vmatpush.xpose.msra.mxu0 0.0
        %1404 = vmatpush.xpose.msra.mxu0 0.0
        %1405 = vmatpush.xpose.msra.mxu0 0.0
        %1406 = vmatpush.xpose.msra.mxu0 0.0
        %1407 = vmatpush.xpose.msra.mxu0 0.0
        %1408 = vmatpush.xpose.msra.mxu0 0.0
        %1409 = vmatpush.xpose.msra.mxu0 0.0
        %1410 = vmatpush.xpose.msra.mxu0 0.0
        %1411 = vmatpush.xpose.msra.mxu0 %v1371
        %1412 = vmatmul.f32.gmra.mxu0 %v1369
        %v1413 = vpop.f32.mrf.mxu0
        %v1414 = vadd.f32 0.0, %v1413
        %1415 = vdwg.mxu0
        %v1416 = vadd.f32 %v1374, %v1394
        %v1417 = vmul.f32 %v1414, 2.0
        %v1418 = vsub.f32 %v1416, %v1417
        %v1419 = vmax.f32 %v1418, 0.0
        %vm1420 = vcmask 40960
        %1421 = vst.msk [vmem:[%s740] sm:$0x1] %vm1420, %v1419
        %v1422 = vadd.f32 %v1419, 1.0
        %v1423 = vadd.f32 %v1419, 0.0001
        %v1424 = vrcp.pop %v1423
        %v1425 = vmul.f32 %v1423, %v1424
        %v1426 = vsub.f32 1.0, %v1425
        %v1427 = vmul.f32 %v1424, %v1426
        %v1428 = vadd.f32 %v1424, %v1427
        %vm1429 = vweird.f32 %v1423
        %vm1430 = vweird.f32 %v1424
        %vm1431 = vmor %vm1429, %vm1430
        %v1432 = vsel %vm1431, %v1424, %v1428
        %v1433 = vand.u32 2147483647, %v1423
        %vm1434 = vcmp.eq.f32.partialorder %v1433, 8.507059e+37
        %v1435 = vand.u32 %v1423, 2147483648
        %v1436 = vor.u32 1.1754944e-38, %v1435
        %v1437 = vsel %vm1434, %v1436, %v1432
        %v1438 = vmul.f32 %v1422, %v1437
        %v1439 = vlog2.pop %v1438
        %v1440 = vmul.f32 %v1439, 0.6931472
        %1441 = vst.msk [vmem:[%s746] sm:$0x1] %vm1420, %v1440
        %v1442 = vld [vmem:[%s13] sm:$0x3f]
        %vm1443 = vcmask 48128
        %v1445 = vsel %vm1443, %v1440, 0
        %vm1447 = vcmask 1045504
        %v1449 = vsel %vm1447, %v1442, 0
        %1451 = vmatpush.msra.mxu0 0.0
        %1452 = vmatpush.msra.mxu0 0.0
        %1453 = vmatpush.msra.mxu0 0.0
        %1454 = vmatpush.msra.mxu0 0.0
        %1455 = vmatpush.msra.mxu0 0.0
        %1456 = vmatpush.msra.mxu0 0.0
        %1457 = vmatpush.msra.mxu0 0.0
        %1458 = vmatpush.msra.mxu0 0.0
        %1459 = vmatpush.msra.mxu0 0.0
        %1460 = vmatpush.msra.mxu0 0.0
        %1461 = vmatpush.msra.mxu0 0.0
        %1462 = vmatpush.msra.mxu0 0.0
        %1463 = vmatpush.msra.mxu0 0.0
        %1464 = vmatpush.msra.mxu0 0.0
        %1465 = vmatpush.msra.mxu0 0.0
        %1466 = vmatpush.msra.mxu0 %v1449
        %1467 = vmatmul.f32.gmra.mxu0 %v1445
        %v1468 = vpop.f32.mrf.mxu0
        %v1469 = vadd.f32 0.0, %v1468
        %1470 = vdwg.mxu0
        %vm1471 = vcmask 8192
        %1472 = vst.msk [vmem:[%s752] sm:$0x1] %vm1471, %v1469
        %v1473 = vsel %vm1471, %v1469, -inf
        %1474 = vmax.xlane.f32.xlu0 %v1473
        %v1475 = vpop.xlane.xlu0 %1474
        %v1476 = vsub.f32 %v1469, %v1475
        %v1477 = vmul.f32 %v1476, 1.442695
        %v1478 = vpow.pop %v1477
        %v1479 = vsel %vm1471, %v1478, 0.0
        %1480 = vadd.xlane.f32.xlu0 %v1479
        %v1481 = vpop.xlane.xlu0 %1480
        %v1482 = vrcp.pop %v1481
        %v1483 = vmul.f32 %v1478, %v1482
        %1484 = vst.msk [vmem:[%s758] sm:$0x1] %vm1471, %v1483
        %p1485 = scmp.lt.s32.totalorder %s44, 1
        %s1486 = scalar_select %p1485, %s44, 1
        %s1487 = smul.addr %s1486, 2
        %s1488 = smul.addr %s1487, 8
        %s1489 = scalar_lea.vmem %s14, %s1488
        %p1490 = scmp.lt.s32.totalorder %s44, 1
        %s1491 = scalar_select %p1490, %s44, 1
        %s1492 = scalar_lea.vmem %s15, %s1491
        %p1493 = scmp.lt.s32.totalorder %s44, 1
        %s1494 = scalar_select %p1493, %s44, 1
        %s1495 = smul.addr %s1494, 2
        %s1496 = scalar_lea.vmem %s16, %s1495
        %s1497 = sand.u32 %s434, 1
        %s1498 = scalar_lea.sflag [#allocation4], %s1497
        %s1499 = sand.u32 %s434, 1
        %s1500 = scalar_lea.vmem [#allocation8], %s1499
        %s1501 = sand.u32 %s44, 1
        %s1502 = scalar_lea.sflag [#allocation10], %s1501
        %s1503 = sand.u32 %s460, 1
        %s1504 = scalar_lea.vmem [#allocation9], %s1503
        %s1505 = sand.u32 %s44, 1
        %s1506 = scalar_lea.sflag [#allocation10], %s1505
        %s1507 = sand.u32 %s486, 1
        %s1508 = scalar_lea.vmem [#allocation11], %s1507
        %s1509 = sand.u32 %s44, 1
        %s1510 = scalar_lea.sflag [#allocation13], %s1509
        %s1511 = sand.u32 %s512, 1
        %s1512 = scalar_lea.vmem [#allocation12], %s1511
        %s1513 = sand.u32 %s44, 1
        %s1514 = scalar_lea.sflag [#allocation13], %s1513
        %s1515 = sand.u32 %s538, 1
        %s1516 = scalar_lea.vmem [#allocation14], %s1515
        // Predicated region
        $region89: #{gnn_nets_forward.1} parent=75 // pred_check
          %p1517 = pneg %p366
        $region90: #{gnn_nets_forward.1} parent=75 // pred_check_branch
          %1519 = sbr.rel (%p1517) target = $region92
        $region91: #{gnn_nets_forward.1} parent=75 // pred_region
          _
        $region92: #{gnn_nets_forward.1} parent=75 // pred_fallthru
          _
        // Predicated region
        $region93: #{gnn_nets_forward.1} parent=75 // pred_check
          %p1520 = pneg %p392
        $region94: #{gnn_nets_forward.1} parent=75 // pred_check_branch
          %1522 = sbr.rel (%p1520) target = $region96
        $region95: #{gnn_nets_forward.1} parent=75 // pred_region
          _
        $region96: #{gnn_nets_forward.1} parent=75 // pred_fallthru
          _
        // Predicated region
        $region97: #{gnn_nets_forward.1} parent=75 // pred_check
          %p1523 = pneg %p418
        $region98: #{gnn_nets_forward.1} parent=75 // pred_check_branch
          %1525 = sbr.rel (%p1523) target = $region100
        $region99: #{gnn_nets_forward.1} parent=75 // pred_region
          _
        $region100: #{gnn_nets_forward.1} parent=75 // pred_fallthru
          _
        // Predicated region
        $region101: #{gnn_nets_forward.1} parent=75 // pred_check
          %p1526 = pneg %p444
        $region102: #{gnn_nets_forward.1} parent=75 // pred_check_branch
          %1528 = sbr.rel (%p1526) target = $region104
        $region103: #{gnn_nets_forward.1} parent=75 // pred_region
          %1530 = vsyncadd %s1498, 0
          %s1531 = scalar_lea.hbm %s17, %s44
          %s1533 = sshll.u32 %s1500, 4
          %s1534 = int_to_ptr.vmem [resolvable:$true] %s1533
          %s1535 = sshll.u32 %s1531, 4
          %s1536 = int_to_ptr.hbm [resolvable:$true] %s1535
          %1538 = dma.vmem_to_hbm [thread:$0]  %s1534, 16, %s1536, %s1498
        $region104: #{gnn_nets_forward.1} parent=75 // pred_fallthru
          _
        // Predicated region
        $region105: #{gnn_nets_forward.1} parent=75 // pred_check
          %p1539 = pneg %p470
        $region106: #{gnn_nets_forward.1} parent=75 // pred_check_branch
          %1541 = sbr.rel (%p1539) target = $region108
        $region107: #{gnn_nets_forward.1} parent=75 // pred_region
          %1543 = vsyncadd %s1502, 0
          %s1544 = scalar_lea.hbm %s18, %s44
          %s1546 = sshll.u32 %s1504, 4
          %s1547 = int_to_ptr.vmem [resolvable:$true] %s1546
          %s1548 = sshll.u32 %s1544, 4
          %s1549 = int_to_ptr.hbm [resolvable:$true] %s1548
          %1551 = dma.vmem_to_hbm [thread:$0]  %s1547, 16, %s1549, %s1502
        $region108: #{gnn_nets_forward.1} parent=75 // pred_fallthru
          _
        // Predicated region
        $region109: #{gnn_nets_forward.1} parent=75 // pred_check
          %p1552 = pneg %p496
        $region110: #{gnn_nets_forward.1} parent=75 // pred_check_branch
          %1554 = sbr.rel (%p1552) target = $region112
        $region111: #{gnn_nets_forward.1} parent=75 // pred_region
          %1556 = vsyncadd %s1506, 0
          %s1557 = scalar_lea.hbm %s19, %s44
          %s1559 = sshll.u32 %s1508, 4
          %s1560 = int_to_ptr.vmem [resolvable:$true] %s1559
          %s1561 = sshll.u32 %s1557, 4
          %s1562 = int_to_ptr.hbm [resolvable:$true] %s1561
          %1564 = dma.vmem_to_hbm [thread:$0]  %s1560, 16, %s1562, %s1506
        $region112: #{gnn_nets_forward.1} parent=75 // pred_fallthru
          _
        // Predicated region
        $region113: #{gnn_nets_forward.1} parent=75 // pred_check
          %p1565 = pneg %p522
        $region114: #{gnn_nets_forward.1} parent=75 // pred_check_branch
          %1567 = sbr.rel (%p1565) target = $region116
        $region115: #{gnn_nets_forward.1} parent=75 // pred_region
          %1569 = vsyncadd %s1510, 0
          %s1570 = scalar_lea.hbm %s20, %s44
          %s1572 = sshll.u32 %s1512, 4
          %s1573 = int_to_ptr.vmem [resolvable:$true] %s1572
          %s1574 = sshll.u32 %s1570, 4
          %s1575 = int_to_ptr.hbm [resolvable:$true] %s1574
          %1577 = dma.vmem_to_hbm [thread:$0]  %s1573, 16, %s1575, %s1510
        $region116: #{gnn_nets_forward.1} parent=75 // pred_fallthru
          _
        // Predicated region
        $region117: #{gnn_nets_forward.1} parent=75 // pred_check
          %p1578 = pneg %p548
        $region118: #{gnn_nets_forward.1} parent=75 // pred_check_branch
          %1580 = sbr.rel (%p1578) target = $region120
        $region119: #{gnn_nets_forward.1} parent=75 // pred_region
          %1582 = vsyncadd %s1514, 0
          %s1583 = scalar_lea.hbm %s21, %s44
          %s1585 = sshll.u32 %s1516, 4
          %s1586 = int_to_ptr.vmem [resolvable:$true] %s1585
          %s1587 = sshll.u32 %s1583, 4
          %s1588 = int_to_ptr.hbm [resolvable:$true] %s1587
          %1590 = dma.vmem_to_hbm [thread:$0]  %s1586, 16, %s1588, %s1514
        $region120: #{gnn_nets_forward.1} parent=75 // pred_fallthru
          _
      $region76: #{gnn_nets_forward.1} parent=5 // pred_fallthru
        _
      %p1591 = scmp.le.s32.totalorder 2, %s39
      // Predicated region
      $region121: #{gnn_nets_forward.1} parent=5 // pred_check
        %p1592 = pneg %p1591
      $region122: #{gnn_nets_forward.1} parent=5 // pred_check_branch
        %1594 = sbr.rel (%p1592) target = $region124
      $region123: #{gnn_nets_forward.1} parent=5 // pred_region
        %s1595 = ssub.s32 %s39, 2
        // Predicated region
        $region125: #{gnn_nets_forward.1} parent=123 // pred_check
          %p1596 = pneg %p372
        $region126: #{gnn_nets_forward.1} parent=123 // pred_check_branch
          %1598 = sbr.rel (%p1596) target = $region128
        $region127: #{gnn_nets_forward.1} parent=123 // pred_region
          %p1599 = scmp.lt.s32.totalorder %s45, 1
          %s1600 = scalar_select %p1599, %s45, 1
          %s1601 = smul.addr %s1600, 2
          %s1602 = smul.addr %s1601, 8
          %s1603 = scalar_lea.vmem %s14, %s1602
        $region128: #{gnn_nets_forward.1} parent=123 // pred_fallthru
          _
        // Predicated region
        $region129: #{gnn_nets_forward.1} parent=123 // pred_check
          %p1604 = pneg %p398
        $region130: #{gnn_nets_forward.1} parent=123 // pred_check_branch
          %1606 = sbr.rel (%p1604) target = $region132
        $region131: #{gnn_nets_forward.1} parent=123 // pred_region
          %p1607 = scmp.lt.s32.totalorder %s45, 1
          %s1608 = scalar_select %p1607, %s45, 1
          %s1609 = scalar_lea.vmem %s15, %s1608
        $region132: #{gnn_nets_forward.1} parent=123 // pred_fallthru
          _
        // Predicated region
        $region133: #{gnn_nets_forward.1} parent=123 // pred_check
          %p1610 = pneg %p424
        $region134: #{gnn_nets_forward.1} parent=123 // pred_check_branch
          %1612 = sbr.rel (%p1610) target = $region136
        $region135: #{gnn_nets_forward.1} parent=123 // pred_region
          %p1613 = scmp.lt.s32.totalorder %s45, 1
          %s1614 = scalar_select %p1613, %s45, 1
          %s1615 = smul.addr %s1614, 2
          %s1616 = scalar_lea.vmem %s16, %s1615
        $region136: #{gnn_nets_forward.1} parent=123 // pred_fallthru
          _
        // Predicated region
        $region137: #{gnn_nets_forward.1} parent=123 // pred_check
          %p1617 = pneg %p450
        $region138: #{gnn_nets_forward.1} parent=123 // pred_check_branch
          %1619 = sbr.rel (%p1617) target = $region140
        $region139: #{gnn_nets_forward.1} parent=123 // pred_region
          %s1620 = sand.u32 %s435, 1
          %s1621 = scalar_lea.sflag [#allocation4], %s1620
          %s1622 = sand.u32 %s435, 1
          %s1623 = scalar_lea.vmem [#allocation8], %s1622
          %1625 = dma.done %s1621, 16
        $region140: #{gnn_nets_forward.1} parent=123 // pred_fallthru
          _
        // Predicated region
        $region141: #{gnn_nets_forward.1} parent=123 // pred_check
          %p1626 = pneg %p476
        $region142: #{gnn_nets_forward.1} parent=123 // pred_check_branch
          %1628 = sbr.rel (%p1626) target = $region144
        $region143: #{gnn_nets_forward.1} parent=123 // pred_region
          %s1629 = sand.u32 %s45, 1
          %s1630 = scalar_lea.sflag [#allocation10], %s1629
          %s1631 = sand.u32 %s461, 1
          %s1632 = scalar_lea.vmem [#allocation9], %s1631
          %1634 = dma.done %s1630, 16
        $region144: #{gnn_nets_forward.1} parent=123 // pred_fallthru
          _
        // Predicated region
        $region145: #{gnn_nets_forward.1} parent=123 // pred_check
          %p1635 = pneg %p502
        $region146: #{gnn_nets_forward.1} parent=123 // pred_check_branch
          %1637 = sbr.rel (%p1635) target = $region148
        $region147: #{gnn_nets_forward.1} parent=123 // pred_region
          %s1638 = sand.u32 %s45, 1
          %s1639 = scalar_lea.sflag [#allocation10], %s1638
          %s1640 = sand.u32 %s487, 1
          %s1641 = scalar_lea.vmem [#allocation11], %s1640
          %1643 = dma.done %s1639, 16
        $region148: #{gnn_nets_forward.1} parent=123 // pred_fallthru
          _
        // Predicated region
        $region149: #{gnn_nets_forward.1} parent=123 // pred_check
          %p1644 = pneg %p528
        $region150: #{gnn_nets_forward.1} parent=123 // pred_check_branch
          %1646 = sbr.rel (%p1644) target = $region152
        $region151: #{gnn_nets_forward.1} parent=123 // pred_region
          %s1647 = sand.u32 %s45, 1
          %s1648 = scalar_lea.sflag [#allocation13], %s1647
          %s1649 = sand.u32 %s513, 1
          %s1650 = scalar_lea.vmem [#allocation12], %s1649
          %1652 = dma.done %s1648, 16
        $region152: #{gnn_nets_forward.1} parent=123 // pred_fallthru
          _
        // Predicated region
        $region153: #{gnn_nets_forward.1} parent=123 // pred_check
          %p1653 = pneg %p554
        $region154: #{gnn_nets_forward.1} parent=123 // pred_check_branch
          %1655 = sbr.rel (%p1653) target = $region156
        $region155: #{gnn_nets_forward.1} parent=123 // pred_region
          %s1656 = sand.u32 %s45, 1
          %s1657 = scalar_lea.sflag [#allocation13], %s1656
          %s1658 = sand.u32 %s539, 1
          %s1659 = scalar_lea.vmem [#allocation14], %s1658
          %1661 = dma.done %s1657, 16
        $region156: #{gnn_nets_forward.1} parent=123 // pred_fallthru
          _
      $region124: #{gnn_nets_forward.1} parent=5 // pred_fallthru
        _
    $region6: #{gnn_nets_forward.1} parent=1 // loop_footer
      %s43 = sadd.s32 1, %s39
    $region7: #{gnn_nets_forward.1} parent=1 // loop_footer_branch
      %38 = sbr.rel target = $region3
    $region8: #{gnn_nets_forward.1} parent=1 // loop_exit
      _
    %1662 = vsyncpa [#allocation3], 1
    %s1663 = scalar_lea.sflag [#allocation3], 1
    %1664 = vsyncpa %s1663, 1
    %1665 = vsyncpa [#allocation6], 1
    %1666 = vsyncpa [#allocation4], 1
    %s1667 = scalar_lea.sflag [#allocation4], 1
    %1668 = vsyncpa %s1667, 1
    %1669 = vsyncpa [#allocation10], 1
    %s1670 = scalar_lea.sflag [#allocation10], 1
    %1671 = vsyncpa %s1670, 1
    %1672 = vsyncpa [#allocation13], 1
    %s1673 = scalar_lea.sflag [#allocation13], 1
    %1674 = vsyncpa %s1673, 1

</llo_original>
